<compile_context>
chip_gen: v6e
topology: v6e:2x2x1
jax: 0.10.0
libtpu: 0.0.40
codegen_flags: <defaults>
</compile_context>

<pallas_src>
import functools

import jax
import jax.numpy as jnp
import numpy as np
from jax.experimental import pallas as pl
from jax.experimental.pallas import tpu as pltpu


# ---------------------------------------------------------------------------
# Pallas kernel: the whole 3-ResUnit chain for one image, VMEM resident.
# ---------------------------------------------------------------------------
def _repeat_units_kernel(x_ref, a_ref, bias_ref, o_ref, *, n_layers):
    """x_ref:   (1, H, W*C)              activation block (one image)
       a_ref:   (n_layers, 3, W*C, W*C)  banded conv matrices (per layer, kh tap)
       bias_ref:(n_layers, 1, W*C)       lane-tiled biases
       o_ref:   (1, H, W*C)              output block
    """
    act = x_ref[0]                       # (H, W*C), stays in VMEM/vregs
    H, WC = act.shape

    def row_shift(v, s):
        # y[h, :] = v[h + s, :], zero-filled outside [0, H)  (top/bottom pad)
        if s == 0:
            return v
        z = jnp.zeros((abs(s), WC), v.dtype)
        if s > 0:
            return jnp.concatenate([v[s:, :], z], axis=0)
        return jnp.concatenate([z, v[:H + s, :]], axis=0)

    def conv3x3(inp, layer):
        # ConvBlock (use_bn=False): ReLU -> Conv2d(3x3, stride 1, pad 1) + bias.
        xr = jnp.maximum(inp, 0.0)
        acc = None
        for kh in range(3):
            y = row_shift(xr, kh - 1)                     # kh tap (H padding)
            t = jnp.dot(y, a_ref[layer, kh],              # kw taps + Cin->Cout
                        preferred_element_type=jnp.float32)
            acc = t if acc is None else acc + t
        return acc + bias_ref[layer]

    for u in range(n_layers // 2):                        # 3 ResUnits
        res = act
        h = conv3x3(act, 2 * u)                           # bn_relu_conv1
        act = conv3x3(h, 2 * u + 1) + res                 # bn_relu_conv2 + res
    o_ref[0] = act.astype(o_ref.dtype)


# ---------------------------------------------------------------------------
# Wrapper: weight preprocessing (pure XLA, tiny) + pallas_call
# ---------------------------------------------------------------------------
def _build_banded_matrices(w_stack, width):
    """w_stack: (L, 3, 3, C, C) in HWIO order (kh, kw, cin, cout).

    Returns A: (L, 3, W*C, W*C) with, per layer and kh tap,
        A[kh][ws*C + ci, w*C + co] = w[kh, ws - w + 1, ci, co]  if |ws - w| <= 1
    (zero elsewhere), i.e. y_kh @ A[kh] performs the kw taps (with left/right
    zero padding) and the channel mixing in a single lane-dense matmul.
    """
    L = w_stack.shape[0]
    C = w_stack.shape[-1]
    WC = width * C
    a = jnp.zeros((L, 3, WC, WC), w_stack.dtype)
    for w in range(width):
        for dw in (-1, 0, 1):
            ws = w + dw
            if 0 <= ws < width:
                blk = w_stack[:, :, dw + 1, :, :]              # (L, 3, C, C)
                a = a.at[:, :, ws * C:(ws + 1) * C, w * C:(w + 1) * C].set(blk)
    return a


def repeat_units_forward(x_nchw, params):
    """RepeatUnits.forward for NCHW input (PyTorch convention)."""
    x = jnp.transpose(x_nchw, (0, 2, 3, 1))                    # NCHW -> NHWC
    N, H, W, C = x.shape
    layers = [p for unit in params for p in unit]              # 2 per ResUnit
    L = len(layers)
    w_stack = jnp.stack([p["w"] for p in layers])              # (L, 3, 3, C, C)
    b_stack = jnp.stack([p["b"] for p in layers])              # (L, C)

    WC = W * C
    a_mats = _build_banded_matrices(w_stack, W)                # (L, 3, WC, WC)
    b_vecs = jnp.tile(b_stack, (1, W)).reshape(L, 1, WC)       # bias per lane
    x_flat = x.reshape(N, H, WC)                               # lane axis = W*C

    kernel = functools.partial(_repeat_units_kernel, n_layers=L)
    out = pl.pallas_call(
        kernel,
        out_shape=jax.ShapeDtypeStruct((N, H, WC), x.dtype),
        grid=(N,),
        in_specs=[
            pl.BlockSpec((1, H, WC), lambda n: (n, 0, 0)),
            pl.BlockSpec((L, 3, WC, WC), lambda n: (0, 0, 0, 0)),
            pl.BlockSpec((L, 1, WC), lambda n: (0, 0, 0)),
        ],
        out_specs=pl.BlockSpec((1, H, WC), lambda n: (n, 0, 0)),
        compiler_params=pltpu.CompilerParams(
            dimension_semantics=("parallel",)),
    )(x_flat, a_mats, b_vecs)

    return jnp.transpose(out.reshape(N, H, W, C), (0, 3, 1, 2))  # NHWC -> NCHW


# ---------------------------------------------------------------------------
# Deterministic parameter init (Conv2d(C, C, 3, stride=1, padding=1) shapes)
# ---------------------------------------------------------------------------
def init_params(key, channels, repeat_num=3):
    params = []
    for _ in range(repeat_num):
        unit = []
        for _ in range(2):
            key, kw_, kb_ = jax.random.split(key, 3)
            w = 0.1 * jax.random.normal(kw_, (3, 3, channels, channels), jnp.float32)
            b = 0.1 * jax.random.normal(kb_, (channels,), jnp.float32)
            unit.append({"w": w, "b": b})
        params.append(tuple(unit))
    return params


# ---------------------------------------------------------------------------
# Pure-JAX reference for correctness check
# ---------------------------------------------------------------------------
def _ref_conv_block(x, w, b, residual=None):
    y = jnp.maximum(x, 0.0)
    y = jax.lax.conv_general_dilated(
        y, w, window_strides=(1, 1), padding=((1, 1), (1, 1)),
        dimension_numbers=("NHWC", "HWIO", "NHWC"))
    y = y + b
    if residual is not None:
        y = y + residual
    return y


if __name__ == "__main__":
    key = jax.random.PRNGKey(0)
    key, kx = jax.random.split(key)
    # PyTorch-convention NCHW input: batch=2, channels=4, 16x16 spatial.
    x = jax.random.normal(kx, (2, 4, 16, 16), jnp.float32)
    params = init_params(key, channels=4, repeat_num=3)

    out = jax.block_until_ready(repeat_units_forward(x, params))

    # Reference forward (pure JAX) for verification.
    xr = jnp.transpose(x, (0, 2, 3, 1))
    for p1, p2 in params:
        h = _ref_conv_block(xr, p1["w"], p1["b"])
        xr = _ref_conv_block(h, p2["w"], p2["b"], residual=xr)
    ref = jnp.transpose(xr, (0, 3, 1, 2))

    np.testing.assert_allclose(np.asarray(out), np.asarray(ref), rtol=1e-4, atol=1e-4)
    print("KERNEL_OK")
</pallas_src>

<mosaic_0001>
module attributes {stable_mosaic.version = 11 : i64} {
  func.func @_repeat_units_kernel(%arg0: i32, %arg1: memref<1x16x64xf32, #tpu.memory_space<vmem>>, %arg2: memref<6x3x64x64xf32, #tpu.memory_space<vmem>>, %arg3: memref<6x1x64xf32, #tpu.memory_space<vmem>>, %arg4: memref<1x16x64xf32, #tpu.memory_space<vmem>>) attributes {dimension_semantics = [#tpu.dimension_semantics<parallel>], iteration_bounds = array<i64: 2>, scalar_prefetch = 0 : i64, scratch_operands = 0 : i64, tpu.core_type = #tpu.core_type<tc>, window_params = [{transform_indices = @transform_0, window_bounds = array<i64: 1, 16, 64>}, {pipeline_mode = #tpu.pipeline_mode<synchronous>, transform_indices = @transform_1, window_bounds = array<i64: 6, 3, 64, 64>}, {pipeline_mode = #tpu.pipeline_mode<synchronous>, transform_indices = @transform_2, window_bounds = array<i64: 6, 1, 64>}, {transform_indices = @transform_3, window_bounds = array<i64: 1, 16, 64>}]} {
    %c0 = arith.constant 0 : index
    %c0_0 = arith.constant 0 : index
    %c0_1 = arith.constant 0 : index
    %0 = vector.load %arg1[%c0, %c0_0, %c0_1] : memref<1x16x64xf32, #tpu.memory_space<vmem>>, vector<1x16x64xf32>
    %1 = vector.shape_cast %0 : vector<1x16x64xf32> to vector<16x64xf32>
    %cst = arith.constant 0.000000e+00 : f32
    %2 = vector.broadcast %cst : f32 to vector<16x64xf32>
    %3 = arith.maximumf %1, %2 : vector<16x64xf32>
    %cst_2 = arith.constant 0.000000e+00 : f32
    %4 = vector.broadcast %cst_2 : f32 to vector<1x64xf32>
    %5 = vector.extract_strided_slice %3 {offsets = [0, 0], sizes = [15, 64], strides = [1, 1]} : vector<16x64xf32> to vector<15x64xf32>
    %6 = tpu.concatenate %4, %5 in 0 : vector<1x64xf32>, vector<15x64xf32> -> vector<16x64xf32>
    %c0_3 = arith.constant 0 : index
    %c0_4 = arith.constant 0 : index
    %c0_5 = arith.constant 0 : index
    %c0_6 = arith.constant 0 : index
    %7 = vector.load %arg2[%c0_3, %c0_4, %c0_5, %c0_6] : memref<6x3x64x64xf32, #tpu.memory_space<vmem>>, vector<1x1x64x64xf32>
    %8 = vector.shape_cast %7 : vector<1x1x64x64xf32> to vector<64x64xf32>
    %cst_7 = arith.constant dense<0.000000e+00> : vector<16x64xf32>
    %9 = tpu.matmul %6, %8, %cst_7 {dimension_numbers = #tpu.dot_dimension_numbers<[1], [0], [0], [1], [0, 0, 1, 1], [], []>} : vector<16x64xf32>, vector<64x64xf32>, vector<16x64xf32> -> vector<16x64xf32>
    %c0_8 = arith.constant 0 : index
    %c1 = arith.constant 1 : index
    %c0_9 = arith.constant 0 : index
    %c0_10 = arith.constant 0 : index
    %10 = vector.load %arg2[%c0_8, %c1, %c0_9, %c0_10] : memref<6x3x64x64xf32, #tpu.memory_space<vmem>>, vector<1x1x64x64xf32>
    %11 = vector.shape_cast %10 : vector<1x1x64x64xf32> to vector<64x64xf32>
    %cst_11 = arith.constant dense<0.000000e+00> : vector<16x64xf32>
    %12 = tpu.matmul %3, %11, %cst_11 {dimension_numbers = #tpu.dot_dimension_numbers<[1], [0], [0], [1], [0, 0, 1, 1], [], []>} : vector<16x64xf32>, vector<64x64xf32>, vector<16x64xf32> -> vector<16x64xf32>
    %13 = arith.addf %9, %12 : vector<16x64xf32>
    %cst_12 = arith.constant 0.000000e+00 : f32
    %14 = vector.broadcast %cst_12 : f32 to vector<1x64xf32>
    %15 = vector.extract_strided_slice %3 {offsets = [1, 0], sizes = [15, 64], strides = [1, 1]} : vector<16x64xf32> to vector<15x64xf32>
    %16 = tpu.concatenate %15, %14 in 0 : vector<15x64xf32>, vector<1x64xf32> -> vector<16x64xf32>
    %c0_13 = arith.constant 0 : index
    %c2 = arith.constant 2 : index
    %c0_14 = arith.constant 0 : index
    %c0_15 = arith.constant 0 : index
    %17 = vector.load %arg2[%c0_13, %c2, %c0_14, %c0_15] : memref<6x3x64x64xf32, #tpu.memory_space<vmem>>, vector<1x1x64x64xf32>
    %18 = vector.shape_cast %17 : vector<1x1x64x64xf32> to vector<64x64xf32>
    %cst_16 = arith.constant dense<0.000000e+00> : vector<16x64xf32>
    %19 = tpu.matmul %16, %18, %cst_16 {dimension_numbers = #tpu.dot_dimension_numbers<[1], [0], [0], [1], [0, 0, 1, 1], [], []>} : vector<16x64xf32>, vector<64x64xf32>, vector<16x64xf32> -> vector<16x64xf32>
    %20 = arith.addf %13, %19 : vector<16x64xf32>
    %c0_17 = arith.constant 0 : index
    %c0_18 = arith.constant 0 : index
    %c0_19 = arith.constant 0 : index
    %21 = vector.load %arg3[%c0_17, %c0_18, %c0_19] : memref<6x1x64xf32, #tpu.memory_space<vmem>>, vector<1x1x64xf32>
    %22 = vector.shape_cast %21 : vector<1x1x64xf32> to vector<1x64xf32>
    %23 = vector.broadcast %22 : vector<1x64xf32> to vector<16x64xf32>
    %24 = arith.addf %20, %23 : vector<16x64xf32>
    %cst_20 = arith.constant 0.000000e+00 : f32
    %25 = vector.broadcast %cst_20 : f32 to vector<16x64xf32>
    %26 = arith.maximumf %24, %25 : vector<16x64xf32>
    %cst_21 = arith.constant 0.000000e+00 : f32
    %27 = vector.broadcast %cst_21 : f32 to vector<1x64xf32>
    %28 = vector.extract_strided_slice %26 {offsets = [0, 0], sizes = [15, 64], strides = [1, 1]} : vector<16x64xf32> to vector<15x64xf32>
    %29 = tpu.concatenate %27, %28 in 0 : vector<1x64xf32>, vector<15x64xf32> -> vector<16x64xf32>
    %c1_22 = arith.constant 1 : index
    %c0_23 = arith.constant 0 : index
    %c0_24 = arith.constant 0 : index
    %c0_25 = arith.constant 0 : index
    %30 = vector.load %arg2[%c1_22, %c0_23, %c0_24, %c0_25] : memref<6x3x64x64xf32, #tpu.memory_space<vmem>>, vector<1x1x64x64xf32>
    %31 = vector.shape_cast %30 : vector<1x1x64x64xf32> to vector<64x64xf32>
    %cst_26 = arith.constant dense<0.000000e+00> : vector<16x64xf32>
    %32 = tpu.matmul %29, %31, %cst_26 {dimension_numbers = #tpu.dot_dimension_numbers<[1], [0], [0], [1], [0, 0, 1, 1], [], []>} : vector<16x64xf32>, vector<64x64xf32>, vector<16x64xf32> -> vector<16x64xf32>
    %c1_27 = arith.constant 1 : index
    %c1_28 = arith.constant 1 : index
    %c0_29 = arith.constant 0 : index
    %c0_30 = arith.constant 0 : index
    %33 = vector.load %arg2[%c1_27, %c1_28, %c0_29, %c0_30] : memref<6x3x64x64xf32, #tpu.memory_space<vmem>>, vector<1x1x64x64xf32>
    %34 = vector.shape_cast %33 : vector<1x1x64x64xf32> to vector<64x64xf32>
    %cst_31 = arith.constant dense<0.000000e+00> : vector<16x64xf32>
    %35 = tpu.matmul %26, %34, %cst_31 {dimension_numbers = #tpu.dot_dimension_numbers<[1], [0], [0], [1], [0, 0, 1, 1], [], []>} : vector<16x64xf32>, vector<64x64xf32>, vector<16x64xf32> -> vector<16x64xf32>
    %36 = arith.addf %32, %35 : vector<16x64xf32>
    %cst_32 = arith.constant 0.000000e+00 : f32
    %37 = vector.broadcast %cst_32 : f32 to vector<1x64xf32>
    %38 = vector.extract_strided_slice %26 {offsets = [1, 0], sizes = [15, 64], strides = [1, 1]} : vector<16x64xf32> to vector<15x64xf32>
    %39 = tpu.concatenate %38, %37 in 0 : vector<15x64xf32>, vector<1x64xf32> -> vector<16x64xf32>
    %c1_33 = arith.constant 1 : index
    %c2_34 = arith.constant 2 : index
    %c0_35 = arith.constant 0 : index
    %c0_36 = arith.constant 0 : index
    %40 = vector.load %arg2[%c1_33, %c2_34, %c0_35, %c0_36] : memref<6x3x64x64xf32, #tpu.memory_space<vmem>>, vector<1x1x64x64xf32>
    %41 = vector.shape_cast %40 : vector<1x1x64x64xf32> to vector<64x64xf32>
    %cst_37 = arith.constant dense<0.000000e+00> : vector<16x64xf32>
    %42 = tpu.matmul %39, %41, %cst_37 {dimension_numbers = #tpu.dot_dimension_numbers<[1], [0], [0], [1], [0, 0, 1, 1], [], []>} : vector<16x64xf32>, vector<64x64xf32>, vector<16x64xf32> -> vector<16x64xf32>
    %43 = arith.addf %36, %42 : vector<16x64xf32>
    %c1_38 = arith.constant 1 : index
    %c0_39 = arith.constant 0 : index
    %c0_40 = arith.constant 0 : index
    %44 = vector.load %arg3[%c1_38, %c0_39, %c0_40] : memref<6x1x64xf32, #tpu.memory_space<vmem>>, vector<1x1x64xf32>
    %45 = vector.shape_cast %44 : vector<1x1x64xf32> to vector<1x64xf32>
    %46 = vector.broadcast %45 : vector<1x64xf32> to vector<16x64xf32>
    %47 = arith.addf %43, %46 : vector<16x64xf32>
    %48 = arith.addf %47, %1 : vector<16x64xf32>
    %cst_41 = arith.constant 0.000000e+00 : f32
    %49 = vector.broadcast %cst_41 : f32 to vector<16x64xf32>
    %50 = arith.maximumf %48, %49 : vector<16x64xf32>
    %cst_42 = arith.constant 0.000000e+00 : f32
    %51 = vector.broadcast %cst_42 : f32 to vector<1x64xf32>
    %52 = vector.extract_strided_slice %50 {offsets = [0, 0], sizes = [15, 64], strides = [1, 1]} : vector<16x64xf32> to vector<15x64xf32>
    %53 = tpu.concatenate %51, %52 in 0 : vector<1x64xf32>, vector<15x64xf32> -> vector<16x64xf32>
    %c2_43 = arith.constant 2 : index
    %c0_44 = arith.constant 0 : index
    %c0_45 = arith.constant 0 : index
    %c0_46 = arith.constant 0 : index
    %54 = vector.load %arg2[%c2_43, %c0_44, %c0_45, %c0_46] : memref<6x3x64x64xf32, #tpu.memory_space<vmem>>, vector<1x1x64x64xf32>
    %55 = vector.shape_cast %54 : vector<1x1x64x64xf32> to vector<64x64xf32>
    %cst_47 = arith.constant dense<0.000000e+00> : vector<16x64xf32>
    %56 = tpu.matmul %53, %55, %cst_47 {dimension_numbers = #tpu.dot_dimension_numbers<[1], [0], [0], [1], [0, 0, 1, 1], [], []>} : vector<16x64xf32>, vector<64x64xf32>, vector<16x64xf32> -> vector<16x64xf32>
    %c2_48 = arith.constant 2 : index
    %c1_49 = arith.constant 1 : index
    %c0_50 = arith.constant 0 : index
    %c0_51 = arith.constant 0 : index
    %57 = vector.load %arg2[%c2_48, %c1_49, %c0_50, %c0_51] : memref<6x3x64x64xf32, #tpu.memory_space<vmem>>, vector<1x1x64x64xf32>
    %58 = vector.shape_cast %57 : vector<1x1x64x64xf32> to vector<64x64xf32>
    %cst_52 = arith.constant dense<0.000000e+00> : vector<16x64xf32>
    %59 = tpu.matmul %50, %58, %cst_52 {dimension_numbers = #tpu.dot_dimension_numbers<[1], [0], [0], [1], [0, 0, 1, 1], [], []>} : vector<16x64xf32>, vector<64x64xf32>, vector<16x64xf32> -> vector<16x64xf32>
    %60 = arith.addf %56, %59 : vector<16x64xf32>
    %cst_53 = arith.constant 0.000000e+00 : f32
    %61 = vector.broadcast %cst_53 : f32 to vector<1x64xf32>
    %62 = vector.extract_strided_slice %50 {offsets = [1, 0], sizes = [15, 64], strides = [1, 1]} : vector<16x64xf32> to vector<15x64xf32>
    %63 = tpu.concatenate %62, %61 in 0 : vector<15x64xf32>, vector<1x64xf32> -> vector<16x64xf32>
    %c2_54 = arith.constant 2 : index
    %c2_55 = arith.constant 2 : index
    %c0_56 = arith.constant 0 : index
    %c0_57 = arith.constant 0 : index
    %64 = vector.load %arg2[%c2_54, %c2_55, %c0_56, %c0_57] : memref<6x3x64x64xf32, #tpu.memory_space<vmem>>, vector<1x1x64x64xf32>
    %65 = vector.shape_cast %64 : vector<1x1x64x64xf32> to vector<64x64xf32>
    %cst_58 = arith.constant dense<0.000000e+00> : vector<16x64xf32>
    %66 = tpu.matmul %63, %65, %cst_58 {dimension_numbers = #tpu.dot_dimension_numbers<[1], [0], [0], [1], [0, 0, 1, 1], [], []>} : vector<16x64xf32>, vector<64x64xf32>, vector<16x64xf32> -> vector<16x64xf32>
    %67 = arith.addf %60, %66 : vector<16x64xf32>
    %c2_59 = arith.constant 2 : index
    %c0_60 = arith.constant 0 : index
    %c0_61 = arith.constant 0 : index
    %68 = vector.load %arg3[%c2_59, %c0_60, %c0_61] : memref<6x1x64xf32, #tpu.memory_space<vmem>>, vector<1x1x64xf32>
    %69 = vector.shape_cast %68 : vector<1x1x64xf32> to vector<1x64xf32>
    %70 = vector.broadcast %69 : vector<1x64xf32> to vector<16x64xf32>
    %71 = arith.addf %67, %70 : vector<16x64xf32>
    %cst_62 = arith.constant 0.000000e+00 : f32
    %72 = vector.broadcast %cst_62 : f32 to vector<16x64xf32>
    %73 = arith.maximumf %71, %72 : vector<16x64xf32>
    %cst_63 = arith.constant 0.000000e+00 : f32
    %74 = vector.broadcast %cst_63 : f32 to vector<1x64xf32>
    %75 = vector.extract_strided_slice %73 {offsets = [0, 0], sizes = [15, 64], strides = [1, 1]} : vector<16x64xf32> to vector<15x64xf32>
    %76 = tpu.concatenate %74, %75 in 0 : vector<1x64xf32>, vector<15x64xf32> -> vector<16x64xf32>
    %c3 = arith.constant 3 : index
    %c0_64 = arith.constant 0 : index
    %c0_65 = arith.constant 0 : index
    %c0_66 = arith.constant 0 : index
    %77 = vector.load %arg2[%c3, %c0_64, %c0_65, %c0_66] : memref<6x3x64x64xf32, #tpu.memory_space<vmem>>, vector<1x1x64x64xf32>
    %78 = vector.shape_cast %77 : vector<1x1x64x64xf32> to vector<64x64xf32>
    %cst_67 = arith.constant dense<0.000000e+00> : vector<16x64xf32>
    %79 = tpu.matmul %76, %78, %cst_67 {dimension_numbers = #tpu.dot_dimension_numbers<[1], [0], [0], [1], [0, 0, 1, 1], [], []>} : vector<16x64xf32>, vector<64x64xf32>, vector<16x64xf32> -> vector<16x64xf32>
    %c3_68 = arith.constant 3 : index
    %c1_69 = arith.constant 1 : index
    %c0_70 = arith.constant 0 : index
    %c0_71 = arith.constant 0 : index
    %80 = vector.load %arg2[%c3_68, %c1_69, %c0_70, %c0_71] : memref<6x3x64x64xf32, #tpu.memory_space<vmem>>, vector<1x1x64x64xf32>
    %81 = vector.shape_cast %80 : vector<1x1x64x64xf32> to vector<64x64xf32>
    %cst_72 = arith.constant dense<0.000000e+00> : vector<16x64xf32>
    %82 = tpu.matmul %73, %81, %cst_72 {dimension_numbers = #tpu.dot_dimension_numbers<[1], [0], [0], [1], [0, 0, 1, 1], [], []>} : vector<16x64xf32>, vector<64x64xf32>, vector<16x64xf32> -> vector<16x64xf32>
    %83 = arith.addf %79, %82 : vector<16x64xf32>
    %cst_73 = arith.constant 0.000000e+00 : f32
    %84 = vector.broadcast %cst_73 : f32 to vector<1x64xf32>
    %85 = vector.extract_strided_slice %73 {offsets = [1, 0], sizes = [15, 64], strides = [1, 1]} : vector<16x64xf32> to vector<15x64xf32>
    %86 = tpu.concatenate %85, %84 in 0 : vector<15x64xf32>, vector<1x64xf32> -> vector<16x64xf32>
    %c3_74 = arith.constant 3 : index
    %c2_75 = arith.constant 2 : index
    %c0_76 = arith.constant 0 : index
    %c0_77 = arith.constant 0 : index
    %87 = vector.load %arg2[%c3_74, %c2_75, %c0_76, %c0_77] : memref<6x3x64x64xf32, #tpu.memory_space<vmem>>, vector<1x1x64x64xf32>
    %88 = vector.shape_cast %87 : vector<1x1x64x64xf32> to vector<64x64xf32>
    %cst_78 = arith.constant dense<0.000000e+00> : vector<16x64xf32>
    %89 = tpu.matmul %86, %88, %cst_78 {dimension_numbers = #tpu.dot_dimension_numbers<[1], [0], [0], [1], [0, 0, 1, 1], [], []>} : vector<16x64xf32>, vector<64x64xf32>, vector<16x64xf32> -> vector<16x64xf32>
    %90 = arith.addf %83, %89 : vector<16x64xf32>
    %c3_79 = arith.constant 3 : index
    %c0_80 = arith.constant 0 : index
    %c0_81 = arith.constant 0 : index
    %91 = vector.load %arg3[%c3_79, %c0_80, %c0_81] : memref<6x1x64xf32, #tpu.memory_space<vmem>>, vector<1x1x64xf32>
    %92 = vector.shape_cast %91 : vector<1x1x64xf32> to vector<1x64xf32>
    %93 = vector.broadcast %92 : vector<1x64xf32> to vector<16x64xf32>
    %94 = arith.addf %90, %93 : vector<16x64xf32>
    %95 = arith.addf %94, %48 : vector<16x64xf32>
    %cst_82 = arith.constant 0.000000e+00 : f32
    %96 = vector.broadcast %cst_82 : f32 to vector<16x64xf32>
    %97 = arith.maximumf %95, %96 : vector<16x64xf32>
    %cst_83 = arith.constant 0.000000e+00 : f32
    %98 = vector.broadcast %cst_83 : f32 to vector<1x64xf32>
    %99 = vector.extract_strided_slice %97 {offsets = [0, 0], sizes = [15, 64], strides = [1, 1]} : vector<16x64xf32> to vector<15x64xf32>
    %100 = tpu.concatenate %98, %99 in 0 : vector<1x64xf32>, vector<15x64xf32> -> vector<16x64xf32>
    %c4 = arith.constant 4 : index
    %c0_84 = arith.constant 0 : index
    %c0_85 = arith.constant 0 : index
    %c0_86 = arith.constant 0 : index
    %101 = vector.load %arg2[%c4, %c0_84, %c0_85, %c0_86] : memref<6x3x64x64xf32, #tpu.memory_space<vmem>>, vector<1x1x64x64xf32>
    %102 = vector.shape_cast %101 : vector<1x1x64x64xf32> to vector<64x64xf32>
    %cst_87 = arith.constant dense<0.000000e+00> : vector<16x64xf32>
    %103 = tpu.matmul %100, %102, %cst_87 {dimension_numbers = #tpu.dot_dimension_numbers<[1], [0], [0], [1], [0, 0, 1, 1], [], []>} : vector<16x64xf32>, vector<64x64xf32>, vector<16x64xf32> -> vector<16x64xf32>
    %c4_88 = arith.constant 4 : index
    %c1_89 = arith.constant 1 : index
    %c0_90 = arith.constant 0 : index
    %c0_91 = arith.constant 0 : index
    %104 = vector.load %arg2[%c4_88, %c1_89, %c0_90, %c0_91] : memref<6x3x64x64xf32, #tpu.memory_space<vmem>>, vector<1x1x64x64xf32>
    %105 = vector.shape_cast %104 : vector<1x1x64x64xf32> to vector<64x64xf32>
    %cst_92 = arith.constant dense<0.000000e+00> : vector<16x64xf32>
    %106 = tpu.matmul %97, %105, %cst_92 {dimension_numbers = #tpu.dot_dimension_numbers<[1], [0], [0], [1], [0, 0, 1, 1], [], []>} : vector<16x64xf32>, vector<64x64xf32>, vector<16x64xf32> -> vector<16x64xf32>
    %107 = arith.addf %103, %106 : vector<16x64xf32>
    %cst_93 = arith.constant 0.000000e+00 : f32
    %108 = vector.broadcast %cst_93 : f32 to vector<1x64xf32>
    %109 = vector.extract_strided_slice %97 {offsets = [1, 0], sizes = [15, 64], strides = [1, 1]} : vector<16x64xf32> to vector<15x64xf32>
    %110 = tpu.concatenate %109, %108 in 0 : vector<15x64xf32>, vector<1x64xf32> -> vector<16x64xf32>
    %c4_94 = arith.constant 4 : index
    %c2_95 = arith.constant 2 : index
    %c0_96 = arith.constant 0 : index
    %c0_97 = arith.constant 0 : index
    %111 = vector.load %arg2[%c4_94, %c2_95, %c0_96, %c0_97] : memref<6x3x64x64xf32, #tpu.memory_space<vmem>>, vector<1x1x64x64xf32>
    %112 = vector.shape_cast %111 : vector<1x1x64x64xf32> to vector<64x64xf32>
    %cst_98 = arith.constant dense<0.000000e+00> : vector<16x64xf32>
    %113 = tpu.matmul %110, %112, %cst_98 {dimension_numbers = #tpu.dot_dimension_numbers<[1], [0], [0], [1], [0, 0, 1, 1], [], []>} : vector<16x64xf32>, vector<64x64xf32>, vector<16x64xf32> -> vector<16x64xf32>
    %114 = arith.addf %107, %113 : vector<16x64xf32>
    %c4_99 = arith.constant 4 : index
    %c0_100 = arith.constant 0 : index
    %c0_101 = arith.constant 0 : index
    %115 = vector.load %arg3[%c4_99, %c0_100, %c0_101] : memref<6x1x64xf32, #tpu.memory_space<vmem>>, vector<1x1x64xf32>
    %116 = vector.shape_cast %115 : vector<1x1x64xf32> to vector<1x64xf32>
    %117 = vector.broadcast %116 : vector<1x64xf32> to vector<16x64xf32>
    %118 = arith.addf %114, %117 : vector<16x64xf32>
    %cst_102 = arith.constant 0.000000e+00 : f32
    %119 = vector.broadcast %cst_102 : f32 to vector<16x64xf32>
    %120 = arith.maximumf %118, %119 : vector<16x64xf32>
    %cst_103 = arith.constant 0.000000e+00 : f32
    %121 = vector.broadcast %cst_103 : f32 to vector<1x64xf32>
    %122 = vector.extract_strided_slice %120 {offsets = [0, 0], sizes = [15, 64], strides = [1, 1]} : vector<16x64xf32> to vector<15x64xf32>
    %123 = tpu.concatenate %121, %122 in 0 : vector<1x64xf32>, vector<15x64xf32> -> vector<16x64xf32>
    %c5 = arith.constant 5 : index
    %c0_104 = arith.constant 0 : index
    %c0_105 = arith.constant 0 : index
    %c0_106 = arith.constant 0 : index
    %124 = vector.load %arg2[%c5, %c0_104, %c0_105, %c0_106] : memref<6x3x64x64xf32, #tpu.memory_space<vmem>>, vector<1x1x64x64xf32>
    %125 = vector.shape_cast %124 : vector<1x1x64x64xf32> to vector<64x64xf32>
    %cst_107 = arith.constant dense<0.000000e+00> : vector<16x64xf32>
    %126 = tpu.matmul %123, %125, %cst_107 {dimension_numbers = #tpu.dot_dimension_numbers<[1], [0], [0], [1], [0, 0, 1, 1], [], []>} : vector<16x64xf32>, vector<64x64xf32>, vector<16x64xf32> -> vector<16x64xf32>
    %c5_108 = arith.constant 5 : index
    %c1_109 = arith.constant 1 : index
    %c0_110 = arith.constant 0 : index
    %c0_111 = arith.constant 0 : index
    %127 = vector.load %arg2[%c5_108, %c1_109, %c0_110, %c0_111] : memref<6x3x64x64xf32, #tpu.memory_space<vmem>>, vector<1x1x64x64xf32>
    %128 = vector.shape_cast %127 : vector<1x1x64x64xf32> to vector<64x64xf32>
    %cst_112 = arith.constant dense<0.000000e+00> : vector<16x64xf32>
    %129 = tpu.matmul %120, %128, %cst_112 {dimension_numbers = #tpu.dot_dimension_numbers<[1], [0], [0], [1], [0, 0, 1, 1], [], []>} : vector<16x64xf32>, vector<64x64xf32>, vector<16x64xf32> -> vector<16x64xf32>
    %130 = arith.addf %126, %129 : vector<16x64xf32>
    %cst_113 = arith.constant 0.000000e+00 : f32
    %131 = vector.broadcast %cst_113 : f32 to vector<1x64xf32>
    %132 = vector.extract_strided_slice %120 {offsets = [1, 0], sizes = [15, 64], strides = [1, 1]} : vector<16x64xf32> to vector<15x64xf32>
    %133 = tpu.concatenate %132, %131 in 0 : vector<15x64xf32>, vector<1x64xf32> -> vector<16x64xf32>
    %c5_114 = arith.constant 5 : index
    %c2_115 = arith.constant 2 : index
    %c0_116 = arith.constant 0 : index
    %c0_117 = arith.constant 0 : index
    %134 = vector.load %arg2[%c5_114, %c2_115, %c0_116, %c0_117] : memref<6x3x64x64xf32, #tpu.memory_space<vmem>>, vector<1x1x64x64xf32>
    %135 = vector.shape_cast %134 : vector<1x1x64x64xf32> to vector<64x64xf32>
    %cst_118 = arith.constant dense<0.000000e+00> : vector<16x64xf32>
    %136 = tpu.matmul %133, %135, %cst_118 {dimension_numbers = #tpu.dot_dimension_numbers<[1], [0], [0], [1], [0, 0, 1, 1], [], []>} : vector<16x64xf32>, vector<64x64xf32>, vector<16x64xf32> -> vector<16x64xf32>
    %137 = arith.addf %130, %136 : vector<16x64xf32>
    %c5_119 = arith.constant 5 : index
    %c0_120 = arith.constant 0 : index
    %c0_121 = arith.constant 0 : index
    %138 = vector.load %arg3[%c5_119, %c0_120, %c0_121] : memref<6x1x64xf32, #tpu.memory_space<vmem>>, vector<1x1x64xf32>
    %139 = vector.shape_cast %138 : vector<1x1x64xf32> to vector<1x64xf32>
    %140 = vector.broadcast %139 : vector<1x64xf32> to vector<16x64xf32>
    %141 = arith.addf %137, %140 : vector<16x64xf32>
    %142 = arith.addf %141, %95 : vector<16x64xf32>
    %c0_122 = arith.constant 0 : index
    %c0_123 = arith.constant 0 : index
    %c0_124 = arith.constant 0 : index
    %143 = vector.load %arg4[%c0_122, %c0_123, %c0_124] : memref<1x16x64xf32, #tpu.memory_space<vmem>>, vector<1x16x64xf32>
    %144 = vector.shape_cast %143 : vector<1x16x64xf32> to vector<16x64xf32>
    %145 = vector.shape_cast %142 : vector<16x64xf32> to vector<1x16x64xf32>
    tpu.vector_store %arg4[%c0_122, %c0_123, %c0_124], %145 {strides = array<i32>} : memref<1x16x64xf32, #tpu.memory_space<vmem>>, vector<1x16x64xf32>,
    return
  }
  func.func @transform_0(%arg0: i32) -> (i32, i32, i32) {
    %c0_i32 = arith.constant 0 : i32
    %c0_i32_0 = arith.constant 0 : i32
    %c0_i32_1 = arith.constant 0 : i32
    return %arg0, %c0_i32, %c0_i32_0 : i32, i32, i32
  }
  func.func @transform_1(%arg0: i32) -> (i32, i32, i32, i32) {
    %c0_i32 = arith.constant 0 : i32
    %c0_i32_0 = arith.constant 0 : i32
    %c0_i32_1 = arith.constant 0 : i32
    %c0_i32_2 = arith.constant 0 : i32
    %c0_i32_3 = arith.constant 0 : i32
    return %c0_i32, %c0_i32_0, %c0_i32_1, %c0_i32_2 : i32, i32, i32, i32
  }
  func.func @transform_2(%arg0: i32) -> (i32, i32, i32) {
    %c0_i32 = arith.constant 0 : i32
    %c0_i32_0 = arith.constant 0 : i32
    %c0_i32_1 = arith.constant 0 : i32
    %c0_i32_2 = arith.constant 0 : i32
    return %c0_i32, %c0_i32_0, %c0_i32_1 : i32, i32, i32
  }
  func.func @transform_3(%arg0: i32) -> (i32, i32, i32) {
    %c0_i32 = arith.constant 0 : i32
    %c0_i32_0 = arith.constant 0 : i32
    %c0_i32_1 = arith.constant 0 : i32
    return %arg0, %c0_i32, %c0_i32_0 : i32, i32, i32
  }
}

</mosaic_0001>

<llo_original>
// kernel: tpu_custom_call.1
$region0: #{tpu_custom_call.1}
  #allocation0 [shape = 'u32[]', space=smem, size = 0x4, offset = 0x4, fixed_abs, tag = 'smem constant byte address 0x4 - core index']
  #allocation1 [shape = 'u32[144,128]{1,0:T(1,128)}', space=vmem, size = 0x12000, scoped, tag = 'internal scratch']
  %s0 = inlined_call_operand.hbm [shape: f32[2,16,64], index: 0, kind: input, shape index: {}]
  %s1 = inlined_call_operand.hbm [shape: f32[6,3,64,64], index: 1, kind: input, shape index: {}]
  %s2 = inlined_call_operand.hbm [shape: f32[6,1,64], index: 2, kind: input, shape index: {}]
  %s3 = inlined_call_operand.hbm [shape: f32[2,16,64], index: 3, kind: output, shape index: {}]
  %s4 = sld [smem:[#allocation0]]
  $region57: #{tpu_custom_call.1} parent=0
    _
  %s6 = ssub.s32 1, %s4
  %s7 = scalar_select 0, %s6, %s4
  $region1: #{tpu_custom_call.1} parent=0
    #allocation2 [shape = 'u8[16384]{0}', space=vmem, size = 0x4000, scoped, tag = 'input window, operand 0']
    #allocation3 [shape = 's32[2]{0}', space=sflag, size = 0x8, scoped, tag = 'scoped memory for tpu_custom_call.1']
    #allocation4 [shape = 's32[2]{0}', space=sflag, size = 0x8, scoped, tag = 'scoped memory for tpu_custom_call.1']
    #allocation5 [shape = 'u8[589824]{0}', space=vmem, size = 0x90000, scoped, tag = 'input window, operand 1, single buffered']
    #allocation6 [shape = 's32[1]{0}', space=sflag, size = 0x4, scoped, tag = 'scoped memory for tpu_custom_call.1']
    #allocation7 [shape = 'u8[3072]{0}', space=vmem, size = 0xc00, scoped, tag = 'input window, operand 2, single buffered']
    #allocation8 [shape = 'u8[16384]{0}', space=vmem, size = 0x4000, scoped, tag = 'output window, operand 0']
    %8 = vsyncpa [#allocation3], 0
    %s9 = scalar_lea.sflag [#allocation3], 1
    %10 = vsyncpa %s9, 0
    %11 = vsyncpa [#allocation6], 0
    %12 = vsyncpa [#allocation4], 0
    %s13 = scalar_lea.sflag [#allocation4], 1
    %14 = vsyncpa %s13, 0
    loop: start=0, step=1, limit=4
    $region2: #{tpu_custom_call.1} parent=1 // loop_pre_header
      _
    $region3: #{tpu_custom_call.1} parent=1 // loop_header
      %s16 = sphi 0, %s20
      %p17 = scmp.ge.s32.totalorder %s16, 4
      %s26 = sphi 0, %s28
      %s29 = sphi 0, %s26
      %s30 = sphi 0, %s29
      %s46 = sphi 0, %s30
      %s50 = sphi 0, %s50
      %s52 = sphi 0, %s50
      %s53 = sphi 0, %s52
      %s67 = sphi 0, %s53
      %s71 = sphi 0, %s71
      %s73 = sphi 0, %s71
      %s74 = sphi 0, %s73
      %s88 = sphi 0, %s74
      %s94 = sphi 0, %s96
      %s97 = sphi 0, %s94
      %s98 = sphi 0, %s97
      %s114 = sphi 0, %s98
    $region4: #{tpu_custom_call.1} parent=1 // loop_header_branch
      %19 = sbr.rel (%p17) target = $region8
    $region5: #{tpu_custom_call.1} parent=1 // loop_body
      %s21 = ssub.s32 %s16, 1
      %s22 = ssub.s32 %s16, 2
      %s23 = sadd.s32 %s16, 1
      %s24 = ssub.s32 %s16, %s23
      %p25 = scmp.eq.s32.totalorder %s24, 0
      %s27 = sadd.s32 %s26, 1
      %s28 = scalar_select %p25, %s26, %s27
      %p31 = pneg %p25
      %p32 = scmp.eq.s32.totalorder %s16, 1
      %p33 = por %p31, %p32
      %p34 = scmp.ne.s32.totalorder %s26, %s29
      %p35 = scmp.eq.s32.totalorder %s16, 0
      %p36 = por %p34, %p35
      %p37 = scmp.ne.s32.totalorder %s26, %s29
      %p38 = scmp.eq.s32.totalorder %s21, 1
      %p39 = por %p37, %p38
      %p40 = scmp.ne.s32.totalorder %s29, %s30
      %p41 = scmp.eq.s32.totalorder %s21, 0
      %p42 = por %p40, %p41
      %p43 = scmp.ne.s32.totalorder %s29, %s30
      %p44 = scmp.eq.s32.totalorder %s22, 1
      %p45 = por %p43, %p44
      %p47 = scmp.ne.s32.totalorder %s30, %s46
      %p48 = scmp.eq.s32.totalorder %s22, 0
      %p49 = por %p47, %p48
      %s51 = sadd.s32 %s50, 1
      %p54 = scmp.eq.s32.totalorder %s16, 1
      %p55 = scmp.ne.s32.totalorder %s50, %s52
      %p56 = scmp.eq.s32.totalorder %s16, 0
      %p57 = por %p55, %p56
      %p58 = scmp.ne.s32.totalorder %s50, %s52
      %p59 = scmp.eq.s32.totalorder %s21, 1
      %p60 = por %p58, %p59
      %p61 = scmp.ne.s32.totalorder %s52, %s53
      %p62 = scmp.eq.s32.totalorder %s21, 0
      %p63 = por %p61, %p62
      %p64 = scmp.ne.s32.totalorder %s52, %s53
      %p65 = scmp.eq.s32.totalorder %s22, 1
      %p66 = por %p64, %p65
      %p68 = scmp.ne.s32.totalorder %s53, %s67
      %p69 = scmp.eq.s32.totalorder %s22, 0
      %p70 = por %p68, %p69
      %s72 = sadd.s32 %s71, 1
      %p75 = scmp.eq.s32.totalorder %s16, 1
      %p76 = scmp.ne.s32.totalorder %s71, %s73
      %p77 = scmp.eq.s32.totalorder %s16, 0
      %p78 = por %p76, %p77
      %p79 = scmp.ne.s32.totalorder %s71, %s73
      %p80 = scmp.eq.s32.totalorder %s21, 1
      %p81 = por %p79, %p80
      %p82 = scmp.ne.s32.totalorder %s73, %s74
      %p83 = scmp.eq.s32.totalorder %s21, 0
      %p84 = por %p82, %p83
      %p85 = scmp.ne.s32.totalorder %s73, %s74
      %p86 = scmp.eq.s32.totalorder %s22, 1
      %p87 = por %p85, %p86
      %p89 = scmp.ne.s32.totalorder %s74, %s88
      %p90 = scmp.eq.s32.totalorder %s22, 0
      %p91 = por %p89, %p90
      %s92 = ssub.s32 %s16, %s23
      %p93 = scmp.eq.s32.totalorder %s92, 0
      %s95 = sadd.s32 %s94, 1
      %s96 = scalar_select %p93, %s94, %s95
      %p99 = pneg %p93
      %p100 = scmp.eq.s32.totalorder %s16, 1
      %p101 = por %p99, %p100
      %p102 = scmp.ne.s32.totalorder %s94, %s97
      %p103 = scmp.eq.s32.totalorder %s16, 0
      %p104 = por %p102, %p103
      %p105 = scmp.ne.s32.totalorder %s94, %s97
      %p106 = scmp.eq.s32.totalorder %s21, 1
      %p107 = por %p105, %p106
      %p108 = scmp.ne.s32.totalorder %s97, %s98
      %p109 = scmp.eq.s32.totalorder %s21, 0
      %p110 = por %p108, %p109
      %p111 = scmp.ne.s32.totalorder %s97, %s98
      %p112 = scmp.eq.s32.totalorder %s22, 1
      %p113 = por %p111, %p112
      %p115 = scmp.ne.s32.totalorder %s98, %s114
      %p116 = scmp.eq.s32.totalorder %s22, 0
      %p117 = por %p115, %p116
      %p118 = scmp.le.s32.totalorder 1, %s16
      %p119 = scmp.lt.s32.totalorder %s16, 3
      %p120 = pnand %p118, %p119
      %p121 = pneg %p120
      // Predicated region
      $region9: #{tpu_custom_call.1} parent=5 // pred_check
        _
      $region10: #{tpu_custom_call.1} parent=5 // pred_check_branch
        %123 = sbr.rel (%p120) target = $region12
      $region11: #{tpu_custom_call.1} parent=5 // pred_region
        %s124 = ssub.s32 %s16, 1
        // Predicated region
        $region13: #{tpu_custom_call.1} parent=11 // pred_check
          %p125 = pneg %p63
        $region14: #{tpu_custom_call.1} parent=11 // pred_check_branch
          %127 = sbr.rel (%p125) target = $region16
        $region15: #{tpu_custom_call.1} parent=11 // pred_region
          %s129 = ssub.s32 18432, 18432
          %130 = vsyncadd [#allocation6], %s129
          %s131 = sshll.u32 [#allocation5], 4
          %s132 = int_to_ptr.vmem [resolvable:$true] %s131
          %137 = dma.hbm_to_vmem [thread:$0]  %s1, 18432, %s132, [#allocation6], 128, 128, 8
        $region16: #{tpu_custom_call.1} parent=11 // pred_fallthru
          _
        // Predicated region
        $region17: #{tpu_custom_call.1} parent=11 // pred_check
          %p138 = pneg %p84
        $region18: #{tpu_custom_call.1} parent=11 // pred_check_branch
          %140 = sbr.rel (%p138) target = $region20
        $region19: #{tpu_custom_call.1} parent=11 // pred_region
          %s142 = ssub.s32 96, 96
          %143 = vsyncadd [#allocation6], %s142
          %s144 = sshll.u32 [#allocation7], 4
          %s145 = int_to_ptr.vmem [resolvable:$true] %s144
          %150 = dma.hbm_to_vmem [thread:$0]  %s2, 96, %s145, [#allocation6], 16, 16, 1
        $region20: #{tpu_custom_call.1} parent=11 // pred_fallthru
          _
      $region12: #{tpu_custom_call.1} parent=5 // pred_fallthru
        _
      %p151 = scmp.lt.s32.totalorder %s16, 2
      // Predicated region
      $region21: #{tpu_custom_call.1} parent=5 // pred_check
        %p152 = pneg %p151
      $region22: #{tpu_custom_call.1} parent=5 // pred_check_branch
        %154 = sbr.rel (%p152) target = $region24
      $region23: #{tpu_custom_call.1} parent=5 // pred_region
        // Predicated region
        $region25: #{tpu_custom_call.1} parent=23 // pred_check
          %p155 = pneg %p36
        $region26: #{tpu_custom_call.1} parent=23 // pred_check_branch
          %157 = sbr.rel (%p155) target = $region28
        $region27: #{tpu_custom_call.1} parent=23 // pred_region
          %s158 = sand.u32 %s26, 1
          %s159 = scalar_lea.sflag [#allocation3], %s158
          %s160 = sand.u32 %s26, 1
          %s161 = smul.addr %s160, 16
          %s162 = scalar_lea.vmem [#allocation2], %s161
          %s164 = ssub.s32 256, 256
          %165 = vsyncadd %s159, %s164
          %s166 = smul.addr %s16, 2
          %s167 = smul.addr %s166, 128
          %s168 = scalar_lea.hbm %s0, %s167
          %s169 = sshll.u32 %s162, 4
          %s170 = int_to_ptr.vmem [resolvable:$true] %s169
          %175 = dma.hbm_to_vmem [thread:$0]  %s168, 256, %s170, %s159, 128, 128, 8
        $region28: #{tpu_custom_call.1} parent=23 // pred_fallthru
          _
      $region24: #{tpu_custom_call.1} parent=5 // pred_fallthru
        _
      %p176 = scmp.le.s32.totalorder 1, %s16
      %p177 = scmp.lt.s32.totalorder %s16, 3
      %p178 = pnand %p176, %p177
      %p179 = pneg %p178
      // Predicated region
      $region29: #{tpu_custom_call.1} parent=5 // pred_check
        _
      $region30: #{tpu_custom_call.1} parent=5 // pred_check_branch
        %181 = sbr.rel (%p178) target = $region32
      $region31: #{tpu_custom_call.1} parent=5 // pred_region
        %s182 = ssub.s32 %s16, 1
        %s183 = sand.u32 %s29, 1
        %s184 = scalar_lea.sflag [#allocation3], %s183
        %s185 = sand.u32 %s29, 1
        %s186 = smul.addr %s185, 16
        %s187 = scalar_lea.vmem [#allocation2], %s186
        // Predicated region
        $region33: #{tpu_custom_call.1} parent=31 // pred_check
          %p188 = pneg %p42
        $region34: #{tpu_custom_call.1} parent=31 // pred_check_branch
          %190 = sbr.rel (%p188) target = $region36
        $region35: #{tpu_custom_call.1} parent=31 // pred_region
          %191 = dma.done %s184, 256
        $region36: #{tpu_custom_call.1} parent=31 // pred_fallthru
          _
        // Predicated region
        $region37: #{tpu_custom_call.1} parent=31 // pred_check
          %p192 = pneg %p63
        $region38: #{tpu_custom_call.1} parent=31 // pred_check_branch
          %194 = sbr.rel (%p192) target = $region40
        $region39: #{tpu_custom_call.1} parent=31 // pred_region
          %195 = dma.done [#allocation6], 18432
        $region40: #{tpu_custom_call.1} parent=31 // pred_fallthru
          _
        // Predicated region
        $region41: #{tpu_custom_call.1} parent=31 // pred_check
          %p196 = pneg %p84
        $region42: #{tpu_custom_call.1} parent=31 // pred_check_branch
          %198 = sbr.rel (%p196) target = $region44
        $region43: #{tpu_custom_call.1} parent=31 // pred_region
          %199 = dma.done [#allocation6], 96
        $region44: #{tpu_custom_call.1} parent=31 // pred_fallthru
          _
        %s200 = sand.u32 %s29, 1
        %s201 = scalar_lea.sflag [#allocation3], %s200
        %s202 = sand.u32 %s29, 1
        %s203 = smul.addr %s202, 16
        %s204 = scalar_lea.vmem [#allocation2], %s203
        %p205 = pneg %p42
        %p206 = pneg %p39
        %p207 = pneg %p63
        %p208 = pneg %p60
        %p209 = pneg %p84
        %p210 = pneg %p81
        %p211 = pneg %p110
        %p212 = pneg %p107
        %s213 = sand.u32 %s97, 1
        %s214 = scalar_lea.sflag [#allocation4], %s213
        %s215 = sand.u32 %s97, 1
        %s216 = smul.addr %s215, 16
        %s217 = scalar_lea.vmem [#allocation8], %s216
        %v218 = vld [vmem:[%s187] sm:$0xff]
        %v219 = vld [vmem:[%s187 + $0x8] sm:$0xff]
        %v220 = vmax.f32 %v218, 0.0
        %v221 = vmax.f32 %v219, 0.0
        %vm224 = vcmask 1040384
        %v225 = vrot.slane %v220, 7
        %v226 = vrot.slane %v221, 7
        %v227 = vsel %vm224, %v225, %v226
        %v229 = vsel %vm224, 0.0, %v225
        %v230 = vld [vmem:[#allocation5] sm:$0xff]
        %v231 = vld [vmem:[#allocation5 + $0x8] sm:$0xff]
        %v232 = vld [vmem:[#allocation5 + $0x10] sm:$0xff]
        %v233 = vld [vmem:[#allocation5 + $0x18] sm:$0xff]
        %v234 = vld [vmem:[#allocation5 + $0x20] sm:$0xff]
        %v235 = vld [vmem:[#allocation5 + $0x28] sm:$0xff]
        %v236 = vld [vmem:[#allocation5 + $0x30] sm:$0xff]
        %v237 = vld [vmem:[#allocation5 + $0x38] sm:$0xff]
        %s238 = scalar_lea.vmem [#allocation5], 64
        %v239 = vld [vmem:[%s238] sm:$0xff]
        %v240 = vld [vmem:[%s238 + $0x8] sm:$0xff]
        %v241 = vld [vmem:[%s238 + $0x10] sm:$0xff]
        %v242 = vld [vmem:[%s238 + $0x18] sm:$0xff]
        %v243 = vld [vmem:[%s238 + $0x20] sm:$0xff]
        %v244 = vld [vmem:[%s238 + $0x28] sm:$0xff]
        %v245 = vld [vmem:[%s238 + $0x30] sm:$0xff]
        %v246 = vld [vmem:[%s238 + $0x38] sm:$0xff]
        %vm247 = vcmask 523264
        %v248 = vsel %vm247, %v220, 0
        %v250 = vsel %vm247, %v221, 0
        %252 = vmatprep.subr.mxu0 0.0
        %253 = vmatpush1.msra.mxu0 0.0
        %254 = vmatprep.subr.mxu0 0.0
        %255 = vmatpush1.msra.mxu0 0.0
        %256 = vmatprep.subr.mxu0 0.0
        %257 = vmatpush1.msra.mxu0 0.0
        %258 = vmatprep.subr.mxu0 0.0
        %259 = vmatpush1.msra.mxu0 0.0
        %260 = vmatprep.subr.mxu0 0.0
        %261 = vmatpush1.msra.mxu0 0.0
        %262 = vmatprep.subr.mxu0 0.0
        %263 = vmatpush1.msra.mxu0 0.0
        %264 = vmatprep.subr.mxu0 0.0
        %265 = vmatpush1.msra.mxu0 0.0
        %266 = vmatprep.subr.mxu0 0.0
        %267 = vmatpush1.msra.mxu0 0.0
        %268 = vmatprep.subr.mxu0 0.0
        %269 = vmatpush1.msra.mxu0 %v246
        %270 = vmatprep.subr.mxu0 0.0
        %271 = vmatpush1.msra.mxu0 %v245
        %272 = vmatprep.subr.mxu0 0.0
        %273 = vmatpush1.msra.mxu0 %v244
        %274 = vmatprep.subr.mxu0 0.0
        %275 = vmatpush1.msra.mxu0 %v243
        %276 = vmatprep.subr.mxu0 0.0
        %277 = vmatpush1.msra.mxu0 %v242
        %278 = vmatprep.subr.mxu0 0.0
        %279 = vmatpush1.msra.mxu0 %v241
        %280 = vmatprep.subr.mxu0 0.0
        %281 = vmatpush1.msra.mxu0 %v240
        %282 = vmatprep.subr.mxu0 0.0
        %283 = vmatpush1.msra.mxu0 %v239
        %284 = vmatprep.subr.mxu0 0.0
        %285 = vmatpush2.msra.mxu0 0.0
        %286 = vmatprep.subr.mxu0 0.0
        %287 = vmatpush2.msra.mxu0 0.0
        %288 = vmatprep.subr.mxu0 0.0
        %289 = vmatpush2.msra.mxu0 0.0
        %290 = vmatprep.subr.mxu0 0.0
        %291 = vmatpush2.msra.mxu0 0.0
        %292 = vmatprep.subr.mxu0 0.0
        %293 = vmatpush2.msra.mxu0 0.0
        %294 = vmatprep.subr.mxu0 0.0
        %295 = vmatpush2.msra.mxu0 0.0
        %296 = vmatprep.subr.mxu0 0.0
        %297 = vmatpush2.msra.mxu0 0.0
        %298 = vmatprep.subr.mxu0 0.0
        %299 = vmatpush2.msra.mxu0 0.0
        %300 = vmatprep.subr.mxu0 0.0
        %301 = vmatpush2.msra.mxu0 0.0
        %302 = vmatprep.subr.mxu0 0.0
        %303 = vmatpush2.msra.mxu0 0.0
        %304 = vmatprep.subr.mxu0 0.0
        %305 = vmatpush2.msra.mxu0 0.0
        %306 = vmatprep.subr.mxu0 0.0
        %307 = vmatpush2.msra.mxu0 0.0
        %308 = vmatprep.subr.mxu0 0.0
        %309 = vmatpush2.msra.mxu0 0.0
        %310 = vmatprep.subr.mxu0 0.0
        %311 = vmatpush2.msra.mxu0 0.0
        %312 = vmatprep.subr.mxu0 0.0
        %313 = vmatpush2.msra.mxu0 0.0
        %314 = vmatprep.subr.mxu0 0.0
        %315 = vmatpush2.msra.mxu0 0.0
        %316 = vmatprep.mubr.f32.mxu0 0.0
        %317 = vmatmul.mubr.f32.gmra.mxu0 %v248
        %v318 = vpop.f32.mrf.mxu0
        %v319 = vadd.f32 0.0, %v318
        %v320 = vpop.f32.mrf.mxu0
        %321 = vmatprep.mubr.f32.mxu0 0.0
        %322 = vmatmul.mubr.f32.gmra.mxu0 %v250
        %v323 = vpop.f32.mrf.mxu0
        %v324 = vadd.f32 0.0, %v323
        %v325 = vpop.f32.mrf.mxu0
        %326 = vdwg.mxu0
        %v328 = vsel %vm247, %v229, 0
        %v330 = vsel %vm247, %v227, 0
        %332 = vmatprep.subr.mxu0 0.0
        %333 = vmatpush1.msra.mxu0 0.0
        %334 = vmatprep.subr.mxu0 0.0
        %335 = vmatpush1.msra.mxu0 0.0
        %336 = vmatprep.subr.mxu0 0.0
        %337 = vmatpush1.msra.mxu0 0.0
        %338 = vmatprep.subr.mxu0 0.0
        %339 = vmatpush1.msra.mxu0 0.0
        %340 = vmatprep.subr.mxu0 0.0
        %341 = vmatpush1.msra.mxu0 0.0
        %342 = vmatprep.subr.mxu0 0.0
        %343 = vmatpush1.msra.mxu0 0.0
        %344 = vmatprep.subr.mxu0 0.0
        %345 = vmatpush1.msra.mxu0 0.0
        %346 = vmatprep.subr.mxu0 0.0
        %347 = vmatpush1.msra.mxu0 0.0
        %348 = vmatprep.subr.mxu0 0.0
        %349 = vmatpush1.msra.mxu0 %v237
        %350 = vmatprep.subr.mxu0 0.0
        %351 = vmatpush1.msra.mxu0 %v236
        %352 = vmatprep.subr.mxu0 0.0
        %353 = vmatpush1.msra.mxu0 %v235
        %354 = vmatprep.subr.mxu0 0.0
        %355 = vmatpush1.msra.mxu0 %v234
        %356 = vmatprep.subr.mxu0 0.0
        %357 = vmatpush1.msra.mxu0 %v233
        %358 = vmatprep.subr.mxu0 0.0
        %359 = vmatpush1.msra.mxu0 %v232
        %360 = vmatprep.subr.mxu0 0.0
        %361 = vmatpush1.msra.mxu0 %v231
        %362 = vmatprep.subr.mxu0 0.0
        %363 = vmatpush1.msra.mxu0 %v230
        %364 = vmatprep.subr.mxu0 0.0
        %365 = vmatpush2.msra.mxu0 0.0
        %366 = vmatprep.subr.mxu0 0.0
        %367 = vmatpush2.msra.mxu0 0.0
        %368 = vmatprep.subr.mxu0 0.0
        %369 = vmatpush2.msra.mxu0 0.0
        %370 = vmatprep.subr.mxu0 0.0
        %371 = vmatpush2.msra.mxu0 0.0
        %372 = vmatprep.subr.mxu0 0.0
        %373 = vmatpush2.msra.mxu0 0.0
        %374 = vmatprep.subr.mxu0 0.0
        %375 = vmatpush2.msra.mxu0 0.0
        %376 = vmatprep.subr.mxu0 0.0
        %377 = vmatpush2.msra.mxu0 0.0
        %378 = vmatprep.subr.mxu0 0.0
        %379 = vmatpush2.msra.mxu0 0.0
        %380 = vmatprep.subr.mxu0 0.0
        %381 = vmatpush2.msra.mxu0 0.0
        %382 = vmatprep.subr.mxu0 0.0
        %383 = vmatpush2.msra.mxu0 0.0
        %384 = vmatprep.subr.mxu0 0.0
        %385 = vmatpush2.msra.mxu0 0.0
        %386 = vmatprep.subr.mxu0 0.0
        %387 = vmatpush2.msra.mxu0 0.0
        %388 = vmatprep.subr.mxu0 0.0
        %389 = vmatpush2.msra.mxu0 0.0
        %390 = vmatprep.subr.mxu0 0.0
        %391 = vmatpush2.msra.mxu0 0.0
        %392 = vmatprep.subr.mxu0 0.0
        %393 = vmatpush2.msra.mxu0 0.0
        %394 = vmatprep.subr.mxu0 0.0
        %395 = vmatpush2.msra.mxu0 0.0
        %396 = vmatprep.mubr.f32.mxu0 0.0
        %397 = vmatmul.mubr.f32.gmra.mxu0 %v328
        %v398 = vpop.f32.mrf.mxu0
        %v399 = vadd.f32 %v319, %v398
        %v400 = vpop.f32.mrf.mxu0
        %401 = vmatprep.mubr.f32.mxu0 0.0
        %402 = vmatmul.mubr.f32.gmra.mxu0 %v330
        %v403 = vpop.f32.mrf.mxu0
        %v404 = vadd.f32 %v324, %v403
        %v405 = vpop.f32.mrf.mxu0
        %406 = vdwg.mxu0
        %vm407 = vcmask 1046528
        %v408 = vrot.slane %v220, 1
        %v409 = vrot.slane %v221, 1
        %v410 = vsel %vm407, %v408, %v409
        %v412 = vsel %vm407, %v409, 0.0
        %s413 = scalar_lea.vmem [#allocation5], 128
        %v414 = vld [vmem:[%s413] sm:$0xff]
        %v415 = vld [vmem:[%s413 + $0x8] sm:$0xff]
        %v416 = vld [vmem:[%s413 + $0x10] sm:$0xff]
        %v417 = vld [vmem:[%s413 + $0x18] sm:$0xff]
        %v418 = vld [vmem:[%s413 + $0x20] sm:$0xff]
        %v419 = vld [vmem:[%s413 + $0x28] sm:$0xff]
        %v420 = vld [vmem:[%s413 + $0x30] sm:$0xff]
        %v421 = vld [vmem:[%s413 + $0x38] sm:$0xff]
        %v422 = vsel %vm247, %v410, 0
        %v425 = vsel %vm247, %v412, 0
        %427 = vmatprep.subr.mxu0 0.0
        %428 = vmatpush1.msra.mxu0 0.0
        %429 = vmatprep.subr.mxu0 0.0
        %430 = vmatpush1.msra.mxu0 0.0
        %431 = vmatprep.subr.mxu0 0.0
        %432 = vmatpush1.msra.mxu0 0.0
        %433 = vmatprep.subr.mxu0 0.0
        %434 = vmatpush1.msra.mxu0 0.0
        %435 = vmatprep.subr.mxu0 0.0
        %436 = vmatpush1.msra.mxu0 0.0
        %437 = vmatprep.subr.mxu0 0.0
        %438 = vmatpush1.msra.mxu0 0.0
        %439 = vmatprep.subr.mxu0 0.0
        %440 = vmatpush1.msra.mxu0 0.0
        %441 = vmatprep.subr.mxu0 0.0
        %442 = vmatpush1.msra.mxu0 0.0
        %443 = vmatprep.subr.mxu0 0.0
        %444 = vmatpush1.msra.mxu0 %v421
        %445 = vmatprep.subr.mxu0 0.0
        %446 = vmatpush1.msra.mxu0 %v420
        %447 = vmatprep.subr.mxu0 0.0
        %448 = vmatpush1.msra.mxu0 %v419
        %449 = vmatprep.subr.mxu0 0.0
        %450 = vmatpush1.msra.mxu0 %v418
        %451 = vmatprep.subr.mxu0 0.0
        %452 = vmatpush1.msra.mxu0 %v417
        %453 = vmatprep.subr.mxu0 0.0
        %454 = vmatpush1.msra.mxu0 %v416
        %455 = vmatprep.subr.mxu0 0.0
        %456 = vmatpush1.msra.mxu0 %v415
        %457 = vmatprep.subr.mxu0 0.0
        %458 = vmatpush1.msra.mxu0 %v414
        %459 = vmatprep.subr.mxu0 0.0
        %460 = vmatpush2.msra.mxu0 0.0
        %461 = vmatprep.subr.mxu0 0.0
        %462 = vmatpush2.msra.mxu0 0.0
        %463 = vmatprep.subr.mxu0 0.0
        %464 = vmatpush2.msra.mxu0 0.0
        %465 = vmatprep.subr.mxu0 0.0
        %466 = vmatpush2.msra.mxu0 0.0
        %467 = vmatprep.subr.mxu0 0.0
        %468 = vmatpush2.msra.mxu0 0.0
        %469 = vmatprep.subr.mxu0 0.0
        %470 = vmatpush2.msra.mxu0 0.0
        %471 = vmatprep.subr.mxu0 0.0
        %472 = vmatpush2.msra.mxu0 0.0
        %473 = vmatprep.subr.mxu0 0.0
        %474 = vmatpush2.msra.mxu0 0.0
        %475 = vmatprep.subr.mxu0 0.0
        %476 = vmatpush2.msra.mxu0 0.0
        %477 = vmatprep.subr.mxu0 0.0
        %478 = vmatpush2.msra.mxu0 0.0
        %479 = vmatprep.subr.mxu0 0.0
        %480 = vmatpush2.msra.mxu0 0.0
        %481 = vmatprep.subr.mxu0 0.0
        %482 = vmatpush2.msra.mxu0 0.0
        %483 = vmatprep.subr.mxu0 0.0
        %484 = vmatpush2.msra.mxu0 0.0
        %485 = vmatprep.subr.mxu0 0.0
        %486 = vmatpush2.msra.mxu0 0.0
        %487 = vmatprep.subr.mxu0 0.0
        %488 = vmatpush2.msra.mxu0 0.0
        %489 = vmatprep.subr.mxu0 0.0
        %490 = vmatpush2.msra.mxu0 0.0
        %491 = vmatprep.mubr.f32.mxu0 0.0
        %492 = vmatmul.mubr.f32.gmra.mxu0 %v422
        %v493 = vpop.f32.mrf.mxu0
        %v494 = vadd.f32 0.0, %v493
        %v495 = vpop.f32.mrf.mxu0
        %496 = vmatprep.mubr.f32.mxu0 0.0
        %497 = vmatmul.mubr.f32.gmra.mxu0 %v425
        %v498 = vpop.f32.mrf.mxu0
        %v499 = vadd.f32 0.0, %v498
        %v500 = vpop.f32.mrf.mxu0
        %501 = vdwg.mxu0
        %v502 = vadd.f32 %v399, %v494
        %v503 = vadd.f32 %v404, %v499
        %v504 = vld [vmem:[#allocation7] sm:$0x1]
        %v506 = vlaneseq
        %v507 = vshrl.u32 %v506, 7
        %v508 = vsub.s32 0, %v507
        %v509 = vrot.slane %v504, %v508
        %v511 = vadd.f32 %v502, %v509
        %v512 = vadd.f32 %v503, %v509
        %v513 = vmax.f32 %v511, 0.0
        %v514 = vmax.f32 %v512, 0.0
        %v517 = vrot.slane %v513, 7
        %v518 = vrot.slane %v514, 7
        %v519 = vsel %vm224, %v517, %v518
        %v521 = vsel %vm224, 0.0, %v517
        %s522 = scalar_lea.vmem [#allocation5], 192
        %v523 = vld [vmem:[%s522] sm:$0xff]
        %v524 = vld [vmem:[%s522 + $0x8] sm:$0xff]
        %v525 = vld [vmem:[%s522 + $0x10] sm:$0xff]
        %v526 = vld [vmem:[%s522 + $0x18] sm:$0xff]
        %v527 = vld [vmem:[%s522 + $0x20] sm:$0xff]
        %v528 = vld [vmem:[%s522 + $0x28] sm:$0xff]
        %v529 = vld [vmem:[%s522 + $0x30] sm:$0xff]
        %v530 = vld [vmem:[%s522 + $0x38] sm:$0xff]
        %s531 = scalar_lea.vmem [#allocation5], 256
        %v532 = vld [vmem:[%s531] sm:$0xff]
        %v533 = vld [vmem:[%s531 + $0x8] sm:$0xff]
        %v534 = vld [vmem:[%s531 + $0x10] sm:$0xff]
        %v535 = vld [vmem:[%s531 + $0x18] sm:$0xff]
        %v536 = vld [vmem:[%s531 + $0x20] sm:$0xff]
        %v537 = vld [vmem:[%s531 + $0x28] sm:$0xff]
        %v538 = vld [vmem:[%s531 + $0x30] sm:$0xff]
        %v539 = vld [vmem:[%s531 + $0x38] sm:$0xff]
        %v540 = vsel %vm247, %v513, 0
        %v542 = vsel %vm247, %v514, 0
        %544 = vmatprep.subr.mxu0 0.0
        %545 = vmatpush1.msra.mxu0 0.0
        %546 = vmatprep.subr.mxu0 0.0
        %547 = vmatpush1.msra.mxu0 0.0
        %548 = vmatprep.subr.mxu0 0.0
        %549 = vmatpush1.msra.mxu0 0.0
        %550 = vmatprep.subr.mxu0 0.0
        %551 = vmatpush1.msra.mxu0 0.0
        %552 = vmatprep.subr.mxu0 0.0
        %553 = vmatpush1.msra.mxu0 0.0
        %554 = vmatprep.subr.mxu0 0.0
        %555 = vmatpush1.msra.mxu0 0.0
        %556 = vmatprep.subr.mxu0 0.0
        %557 = vmatpush1.msra.mxu0 0.0
        %558 = vmatprep.subr.mxu0 0.0
        %559 = vmatpush1.msra.mxu0 0.0
        %560 = vmatprep.subr.mxu0 0.0
        %561 = vmatpush1.msra.mxu0 %v539
        %562 = vmatprep.subr.mxu0 0.0
        %563 = vmatpush1.msra.mxu0 %v538
        %564 = vmatprep.subr.mxu0 0.0
        %565 = vmatpush1.msra.mxu0 %v537
        %566 = vmatprep.subr.mxu0 0.0
        %567 = vmatpush1.msra.mxu0 %v536
        %568 = vmatprep.subr.mxu0 0.0
        %569 = vmatpush1.msra.mxu0 %v535
        %570 = vmatprep.subr.mxu0 0.0
        %571 = vmatpush1.msra.mxu0 %v534
        %572 = vmatprep.subr.mxu0 0.0
        %573 = vmatpush1.msra.mxu0 %v533
        %574 = vmatprep.subr.mxu0 0.0
        %575 = vmatpush1.msra.mxu0 %v532
        %576 = vmatprep.subr.mxu0 0.0
        %577 = vmatpush2.msra.mxu0 0.0
        %578 = vmatprep.subr.mxu0 0.0
        %579 = vmatpush2.msra.mxu0 0.0
        %580 = vmatprep.subr.mxu0 0.0
        %581 = vmatpush2.msra.mxu0 0.0
        %582 = vmatprep.subr.mxu0 0.0
        %583 = vmatpush2.msra.mxu0 0.0
        %584 = vmatprep.subr.mxu0 0.0
        %585 = vmatpush2.msra.mxu0 0.0
        %586 = vmatprep.subr.mxu0 0.0
        %587 = vmatpush2.msra.mxu0 0.0
        %588 = vmatprep.subr.mxu0 0.0
        %589 = vmatpush2.msra.mxu0 0.0
        %590 = vmatprep.subr.mxu0 0.0
        %591 = vmatpush2.msra.mxu0 0.0
        %592 = vmatprep.subr.mxu0 0.0
        %593 = vmatpush2.msra.mxu0 0.0
        %594 = vmatprep.subr.mxu0 0.0
        %595 = vmatpush2.msra.mxu0 0.0
        %596 = vmatprep.subr.mxu0 0.0
        %597 = vmatpush2.msra.mxu0 0.0
        %598 = vmatprep.subr.mxu0 0.0
        %599 = vmatpush2.msra.mxu0 0.0
        %600 = vmatprep.subr.mxu0 0.0
        %601 = vmatpush2.msra.mxu0 0.0
        %602 = vmatprep.subr.mxu0 0.0
        %603 = vmatpush2.msra.mxu0 0.0
        %604 = vmatprep.subr.mxu0 0.0
        %605 = vmatpush2.msra.mxu0 0.0
        %606 = vmatprep.subr.mxu0 0.0
        %607 = vmatpush2.msra.mxu0 0.0
        %608 = vmatprep.mubr.f32.mxu0 0.0
        %609 = vmatmul.mubr.f32.gmra.mxu0 %v540
        %v610 = vpop.f32.mrf.mxu0
        %v611 = vadd.f32 0.0, %v610
        %v612 = vpop.f32.mrf.mxu0
        %613 = vmatprep.mubr.f32.mxu0 0.0
        %614 = vmatmul.mubr.f32.gmra.mxu0 %v542
        %v615 = vpop.f32.mrf.mxu0
        %v616 = vadd.f32 0.0, %v615
        %v617 = vpop.f32.mrf.mxu0
        %618 = vdwg.mxu0
        %v620 = vsel %vm247, %v521, 0
        %v622 = vsel %vm247, %v519, 0
        %624 = vmatprep.subr.mxu0 0.0
        %625 = vmatpush1.msra.mxu0 0.0
        %626 = vmatprep.subr.mxu0 0.0
        %627 = vmatpush1.msra.mxu0 0.0
        %628 = vmatprep.subr.mxu0 0.0
        %629 = vmatpush1.msra.mxu0 0.0
        %630 = vmatprep.subr.mxu0 0.0
        %631 = vmatpush1.msra.mxu0 0.0
        %632 = vmatprep.subr.mxu0 0.0
        %633 = vmatpush1.msra.mxu0 0.0
        %634 = vmatprep.subr.mxu0 0.0
        %635 = vmatpush1.msra.mxu0 0.0
        %636 = vmatprep.subr.mxu0 0.0
        %637 = vmatpush1.msra.mxu0 0.0
        %638 = vmatprep.subr.mxu0 0.0
        %639 = vmatpush1.msra.mxu0 0.0
        %640 = vmatprep.subr.mxu0 0.0
        %641 = vmatpush1.msra.mxu0 %v530
        %642 = vmatprep.subr.mxu0 0.0
        %643 = vmatpush1.msra.mxu0 %v529
        %644 = vmatprep.subr.mxu0 0.0
        %645 = vmatpush1.msra.mxu0 %v528
        %646 = vmatprep.subr.mxu0 0.0
        %647 = vmatpush1.msra.mxu0 %v527
        %648 = vmatprep.subr.mxu0 0.0
        %649 = vmatpush1.msra.mxu0 %v526
        %650 = vmatprep.subr.mxu0 0.0
        %651 = vmatpush1.msra.mxu0 %v525
        %652 = vmatprep.subr.mxu0 0.0
        %653 = vmatpush1.msra.mxu0 %v524
        %654 = vmatprep.subr.mxu0 0.0
        %655 = vmatpush1.msra.mxu0 %v523
        %656 = vmatprep.subr.mxu0 0.0
        %657 = vmatpush2.msra.mxu0 0.0
        %658 = vmatprep.subr.mxu0 0.0
        %659 = vmatpush2.msra.mxu0 0.0
        %660 = vmatprep.subr.mxu0 0.0
        %661 = vmatpush2.msra.mxu0 0.0
        %662 = vmatprep.subr.mxu0 0.0
        %663 = vmatpush2.msra.mxu0 0.0
        %664 = vmatprep.subr.mxu0 0.0
        %665 = vmatpush2.msra.mxu0 0.0
        %666 = vmatprep.subr.mxu0 0.0
        %667 = vmatpush2.msra.mxu0 0.0
        %668 = vmatprep.subr.mxu0 0.0
        %669 = vmatpush2.msra.mxu0 0.0
        %670 = vmatprep.subr.mxu0 0.0
        %671 = vmatpush2.msra.mxu0 0.0
        %672 = vmatprep.subr.mxu0 0.0
        %673 = vmatpush2.msra.mxu0 0.0
        %674 = vmatprep.subr.mxu0 0.0
        %675 = vmatpush2.msra.mxu0 0.0
        %676 = vmatprep.subr.mxu0 0.0
        %677 = vmatpush2.msra.mxu0 0.0
        %678 = vmatprep.subr.mxu0 0.0
        %679 = vmatpush2.msra.mxu0 0.0
        %680 = vmatprep.subr.mxu0 0.0
        %681 = vmatpush2.msra.mxu0 0.0
        %682 = vmatprep.subr.mxu0 0.0
        %683 = vmatpush2.msra.mxu0 0.0
        %684 = vmatprep.subr.mxu0 0.0
        %685 = vmatpush2.msra.mxu0 0.0
        %686 = vmatprep.subr.mxu0 0.0
        %687 = vmatpush2.msra.mxu0 0.0
        %688 = vmatprep.mubr.f32.mxu0 0.0
        %689 = vmatmul.mubr.f32.gmra.mxu0 %v620
        %v690 = vpop.f32.mrf.mxu0
        %v691 = vadd.f32 %v611, %v690
        %v692 = vpop.f32.mrf.mxu0
        %693 = vmatprep.mubr.f32.mxu0 0.0
        %694 = vmatmul.mubr.f32.gmra.mxu0 %v622
        %v695 = vpop.f32.mrf.mxu0
        %v696 = vadd.f32 %v616, %v695
        %v697 = vpop.f32.mrf.mxu0
        %698 = vdwg.mxu0
        %v699 = vrot.slane %v513, 1
        %v700 = vrot.slane %v514, 1
        %v701 = vsel %vm407, %v699, %v700
        %v703 = vsel %vm407, %v700, 0.0
        %s704 = scalar_lea.vmem [#allocation5], 320
        %v705 = vld [vmem:[%s704] sm:$0xff]
        %v706 = vld [vmem:[%s704 + $0x8] sm:$0xff]
        %v707 = vld [vmem:[%s704 + $0x10] sm:$0xff]
        %v708 = vld [vmem:[%s704 + $0x18] sm:$0xff]
        %v709 = vld [vmem:[%s704 + $0x20] sm:$0xff]
        %v710 = vld [vmem:[%s704 + $0x28] sm:$0xff]
        %v711 = vld [vmem:[%s704 + $0x30] sm:$0xff]
        %v712 = vld [vmem:[%s704 + $0x38] sm:$0xff]
        %v713 = vsel %vm247, %v701, 0
        %v716 = vsel %vm247, %v703, 0
        %718 = vmatprep.subr.mxu0 0.0
        %719 = vmatpush1.msra.mxu0 0.0
        %720 = vmatprep.subr.mxu0 0.0
        %721 = vmatpush1.msra.mxu0 0.0
        %722 = vmatprep.subr.mxu0 0.0
        %723 = vmatpush1.msra.mxu0 0.0
        %724 = vmatprep.subr.mxu0 0.0
        %725 = vmatpush1.msra.mxu0 0.0
        %726 = vmatprep.subr.mxu0 0.0
        %727 = vmatpush1.msra.mxu0 0.0
        %728 = vmatprep.subr.mxu0 0.0
        %729 = vmatpush1.msra.mxu0 0.0
        %730 = vmatprep.subr.mxu0 0.0
        %731 = vmatpush1.msra.mxu0 0.0
        %732 = vmatprep.subr.mxu0 0.0
        %733 = vmatpush1.msra.mxu0 0.0
        %734 = vmatprep.subr.mxu0 0.0
        %735 = vmatpush1.msra.mxu0 %v712
        %736 = vmatprep.subr.mxu0 0.0
        %737 = vmatpush1.msra.mxu0 %v711
        %738 = vmatprep.subr.mxu0 0.0
        %739 = vmatpush1.msra.mxu0 %v710
        %740 = vmatprep.subr.mxu0 0.0
        %741 = vmatpush1.msra.mxu0 %v709
        %742 = vmatprep.subr.mxu0 0.0
        %743 = vmatpush1.msra.mxu0 %v708
        %744 = vmatprep.subr.mxu0 0.0
        %745 = vmatpush1.msra.mxu0 %v707
        %746 = vmatprep.subr.mxu0 0.0
        %747 = vmatpush1.msra.mxu0 %v706
        %748 = vmatprep.subr.mxu0 0.0
        %749 = vmatpush1.msra.mxu0 %v705
        %750 = vmatprep.subr.mxu0 0.0
        %751 = vmatpush2.msra.mxu0 0.0
        %752 = vmatprep.subr.mxu0 0.0
        %753 = vmatpush2.msra.mxu0 0.0
        %754 = vmatprep.subr.mxu0 0.0
        %755 = vmatpush2.msra.mxu0 0.0
        %756 = vmatprep.subr.mxu0 0.0
        %757 = vmatpush2.msra.mxu0 0.0
        %758 = vmatprep.subr.mxu0 0.0
        %759 = vmatpush2.msra.mxu0 0.0
        %760 = vmatprep.subr.mxu0 0.0
        %761 = vmatpush2.msra.mxu0 0.0
        %762 = vmatprep.subr.mxu0 0.0
        %763 = vmatpush2.msra.mxu0 0.0
        %764 = vmatprep.subr.mxu0 0.0
        %765 = vmatpush2.msra.mxu0 0.0
        %766 = vmatprep.subr.mxu0 0.0
        %767 = vmatpush2.msra.mxu0 0.0
        %768 = vmatprep.subr.mxu0 0.0
        %769 = vmatpush2.msra.mxu0 0.0
        %770 = vmatprep.subr.mxu0 0.0
        %771 = vmatpush2.msra.mxu0 0.0
        %772 = vmatprep.subr.mxu0 0.0
        %773 = vmatpush2.msra.mxu0 0.0
        %774 = vmatprep.subr.mxu0 0.0
        %775 = vmatpush2.msra.mxu0 0.0
        %776 = vmatprep.subr.mxu0 0.0
        %777 = vmatpush2.msra.mxu0 0.0
        %778 = vmatprep.subr.mxu0 0.0
        %779 = vmatpush2.msra.mxu0 0.0
        %780 = vmatprep.subr.mxu0 0.0
        %781 = vmatpush2.msra.mxu0 0.0
        %782 = vmatprep.mubr.f32.mxu0 0.0
        %783 = vmatmul.mubr.f32.gmra.mxu0 %v713
        %v784 = vpop.f32.mrf.mxu0
        %v785 = vadd.f32 0.0, %v784
        %v786 = vpop.f32.mrf.mxu0
        %787 = vmatprep.mubr.f32.mxu0 0.0
        %788 = vmatmul.mubr.f32.gmra.mxu0 %v716
        %v789 = vpop.f32.mrf.mxu0
        %v790 = vadd.f32 0.0, %v789
        %v791 = vpop.f32.mrf.mxu0
        %792 = vdwg.mxu0
        %v793 = vadd.f32 %v691, %v785
        %v794 = vadd.f32 %v696, %v790
        %s795 = scalar_lea.vmem [#allocation7], 1
        %v796 = vld [vmem:[%s795] sm:$0x1]
        %v798 = vlaneseq
        %v799 = vshrl.u32 %v798, 7
        %v800 = vsub.s32 0, %v799
        %v801 = vrot.slane %v796, %v800
        %v803 = vadd.f32 %v793, %v801
        %v804 = vadd.f32 %v794, %v801
        %v805 = vadd.f32 %v803, %v218
        %v806 = vadd.f32 %v804, %v219
        %v807 = vmax.f32 %v805, 0.0
        %v808 = vmax.f32 %v806, 0.0
        %v811 = vrot.slane %v807, 7
        %v812 = vrot.slane %v808, 7
        %v813 = vsel %vm224, %v811, %v812
        %v815 = vsel %vm224, 0.0, %v811
        %s816 = scalar_lea.vmem [#allocation5], 384
        %v817 = vld [vmem:[%s816] sm:$0xff]
        %v818 = vld [vmem:[%s816 + $0x8] sm:$0xff]
        %v819 = vld [vmem:[%s816 + $0x10] sm:$0xff]
        %v820 = vld [vmem:[%s816 + $0x18] sm:$0xff]
        %v821 = vld [vmem:[%s816 + $0x20] sm:$0xff]
        %v822 = vld [vmem:[%s816 + $0x28] sm:$0xff]
        %v823 = vld [vmem:[%s816 + $0x30] sm:$0xff]
        %v824 = vld [vmem:[%s816 + $0x38] sm:$0xff]
        %s825 = scalar_lea.vmem [#allocation5], 448
        %v826 = vld [vmem:[%s825] sm:$0xff]
        %v827 = vld [vmem:[%s825 + $0x8] sm:$0xff]
        %v828 = vld [vmem:[%s825 + $0x10] sm:$0xff]
        %v829 = vld [vmem:[%s825 + $0x18] sm:$0xff]
        %v830 = vld [vmem:[%s825 + $0x20] sm:$0xff]
        %v831 = vld [vmem:[%s825 + $0x28] sm:$0xff]
        %v832 = vld [vmem:[%s825 + $0x30] sm:$0xff]
        %v833 = vld [vmem:[%s825 + $0x38] sm:$0xff]
        %v834 = vsel %vm247, %v807, 0
        %v836 = vsel %vm247, %v808, 0
        %838 = vmatprep.subr.mxu0 0.0
        %839 = vmatpush1.msra.mxu0 0.0
        %840 = vmatprep.subr.mxu0 0.0
        %841 = vmatpush1.msra.mxu0 0.0
        %842 = vmatprep.subr.mxu0 0.0
        %843 = vmatpush1.msra.mxu0 0.0
        %844 = vmatprep.subr.mxu0 0.0
        %845 = vmatpush1.msra.mxu0 0.0
        %846 = vmatprep.subr.mxu0 0.0
        %847 = vmatpush1.msra.mxu0 0.0
        %848 = vmatprep.subr.mxu0 0.0
        %849 = vmatpush1.msra.mxu0 0.0
        %850 = vmatprep.subr.mxu0 0.0
        %851 = vmatpush1.msra.mxu0 0.0
        %852 = vmatprep.subr.mxu0 0.0
        %853 = vmatpush1.msra.mxu0 0.0
        %854 = vmatprep.subr.mxu0 0.0
        %855 = vmatpush1.msra.mxu0 %v833
        %856 = vmatprep.subr.mxu0 0.0
        %857 = vmatpush1.msra.mxu0 %v832
        %858 = vmatprep.subr.mxu0 0.0
        %859 = vmatpush1.msra.mxu0 %v831
        %860 = vmatprep.subr.mxu0 0.0
        %861 = vmatpush1.msra.mxu0 %v830
        %862 = vmatprep.subr.mxu0 0.0
        %863 = vmatpush1.msra.mxu0 %v829
        %864 = vmatprep.subr.mxu0 0.0
        %865 = vmatpush1.msra.mxu0 %v828
        %866 = vmatprep.subr.mxu0 0.0
        %867 = vmatpush1.msra.mxu0 %v827
        %868 = vmatprep.subr.mxu0 0.0
        %869 = vmatpush1.msra.mxu0 %v826
        %870 = vmatprep.subr.mxu0 0.0
        %871 = vmatpush2.msra.mxu0 0.0
        %872 = vmatprep.subr.mxu0 0.0
        %873 = vmatpush2.msra.mxu0 0.0
        %874 = vmatprep.subr.mxu0 0.0
        %875 = vmatpush2.msra.mxu0 0.0
        %876 = vmatprep.subr.mxu0 0.0
        %877 = vmatpush2.msra.mxu0 0.0
        %878 = vmatprep.subr.mxu0 0.0
        %879 = vmatpush2.msra.mxu0 0.0
        %880 = vmatprep.subr.mxu0 0.0
        %881 = vmatpush2.msra.mxu0 0.0
        %882 = vmatprep.subr.mxu0 0.0
        %883 = vmatpush2.msra.mxu0 0.0
        %884 = vmatprep.subr.mxu0 0.0
        %885 = vmatpush2.msra.mxu0 0.0
        %886 = vmatprep.subr.mxu0 0.0
        %887 = vmatpush2.msra.mxu0 0.0
        %888 = vmatprep.subr.mxu0 0.0
        %889 = vmatpush2.msra.mxu0 0.0
        %890 = vmatprep.subr.mxu0 0.0
        %891 = vmatpush2.msra.mxu0 0.0
        %892 = vmatprep.subr.mxu0 0.0
        %893 = vmatpush2.msra.mxu0 0.0
        %894 = vmatprep.subr.mxu0 0.0
        %895 = vmatpush2.msra.mxu0 0.0
        %896 = vmatprep.subr.mxu0 0.0
        %897 = vmatpush2.msra.mxu0 0.0
        %898 = vmatprep.subr.mxu0 0.0
        %899 = vmatpush2.msra.mxu0 0.0
        %900 = vmatprep.subr.mxu0 0.0
        %901 = vmatpush2.msra.mxu0 0.0
        %902 = vmatprep.mubr.f32.mxu0 0.0
        %903 = vmatmul.mubr.f32.gmra.mxu0 %v834
        %v904 = vpop.f32.mrf.mxu0
        %v905 = vadd.f32 0.0, %v904
        %v906 = vpop.f32.mrf.mxu0
        %907 = vmatprep.mubr.f32.mxu0 0.0
        %908 = vmatmul.mubr.f32.gmra.mxu0 %v836
        %v909 = vpop.f32.mrf.mxu0
        %v910 = vadd.f32 0.0, %v909
        %v911 = vpop.f32.mrf.mxu0
        %912 = vdwg.mxu0
        %v914 = vsel %vm247, %v815, 0
        %v916 = vsel %vm247, %v813, 0
        %918 = vmatprep.subr.mxu0 0.0
        %919 = vmatpush1.msra.mxu0 0.0
        %920 = vmatprep.subr.mxu0 0.0
        %921 = vmatpush1.msra.mxu0 0.0
        %922 = vmatprep.subr.mxu0 0.0
        %923 = vmatpush1.msra.mxu0 0.0
        %924 = vmatprep.subr.mxu0 0.0
        %925 = vmatpush1.msra.mxu0 0.0
        %926 = vmatprep.subr.mxu0 0.0
        %927 = vmatpush1.msra.mxu0 0.0
        %928 = vmatprep.subr.mxu0 0.0
        %929 = vmatpush1.msra.mxu0 0.0
        %930 = vmatprep.subr.mxu0 0.0
        %931 = vmatpush1.msra.mxu0 0.0
        %932 = vmatprep.subr.mxu0 0.0
        %933 = vmatpush1.msra.mxu0 0.0
        %934 = vmatprep.subr.mxu0 0.0
        %935 = vmatpush1.msra.mxu0 %v824
        %936 = vmatprep.subr.mxu0 0.0
        %937 = vmatpush1.msra.mxu0 %v823
        %938 = vmatprep.subr.mxu0 0.0
        %939 = vmatpush1.msra.mxu0 %v822
        %940 = vmatprep.subr.mxu0 0.0
        %941 = vmatpush1.msra.mxu0 %v821
        %942 = vmatprep.subr.mxu0 0.0
        %943 = vmatpush1.msra.mxu0 %v820
        %944 = vmatprep.subr.mxu0 0.0
        %945 = vmatpush1.msra.mxu0 %v819
        %946 = vmatprep.subr.mxu0 0.0
        %947 = vmatpush1.msra.mxu0 %v818
        %948 = vmatprep.subr.mxu0 0.0
        %949 = vmatpush1.msra.mxu0 %v817
        %950 = vmatprep.subr.mxu0 0.0
        %951 = vmatpush2.msra.mxu0 0.0
        %952 = vmatprep.subr.mxu0 0.0
        %953 = vmatpush2.msra.mxu0 0.0
        %954 = vmatprep.subr.mxu0 0.0
        %955 = vmatpush2.msra.mxu0 0.0
        %956 = vmatprep.subr.mxu0 0.0
        %957 = vmatpush2.msra.mxu0 0.0
        %958 = vmatprep.subr.mxu0 0.0
        %959 = vmatpush2.msra.mxu0 0.0
        %960 = vmatprep.subr.mxu0 0.0
        %961 = vmatpush2.msra.mxu0 0.0
        %962 = vmatprep.subr.mxu0 0.0
        %963 = vmatpush2.msra.mxu0 0.0
        %964 = vmatprep.subr.mxu0 0.0
        %965 = vmatpush2.msra.mxu0 0.0
        %966 = vmatprep.subr.mxu0 0.0
        %967 = vmatpush2.msra.mxu0 0.0
        %968 = vmatprep.subr.mxu0 0.0
        %969 = vmatpush2.msra.mxu0 0.0
        %970 = vmatprep.subr.mxu0 0.0
        %971 = vmatpush2.msra.mxu0 0.0
        %972 = vmatprep.subr.mxu0 0.0
        %973 = vmatpush2.msra.mxu0 0.0
        %974 = vmatprep.subr.mxu0 0.0
        %975 = vmatpush2.msra.mxu0 0.0
        %976 = vmatprep.subr.mxu0 0.0
        %977 = vmatpush2.msra.mxu0 0.0
        %978 = vmatprep.subr.mxu0 0.0
        %979 = vmatpush2.msra.mxu0 0.0
        %980 = vmatprep.subr.mxu0 0.0
        %981 = vmatpush2.msra.mxu0 0.0
        %982 = vmatprep.mubr.f32.mxu0 0.0
        %983 = vmatmul.mubr.f32.gmra.mxu0 %v914
        %v984 = vpop.f32.mrf.mxu0
        %v985 = vadd.f32 %v905, %v984
        %v986 = vpop.f32.mrf.mxu0
        %987 = vmatprep.mubr.f32.mxu0 0.0
        %988 = vmatmul.mubr.f32.gmra.mxu0 %v916
        %v989 = vpop.f32.mrf.mxu0
        %v990 = vadd.f32 %v910, %v989
        %v991 = vpop.f32.mrf.mxu0
        %992 = vdwg.mxu0
        %v993 = vrot.slane %v807, 1
        %v994 = vrot.slane %v808, 1
        %v995 = vsel %vm407, %v993, %v994
        %v997 = vsel %vm407, %v994, 0.0
        %s998 = scalar_lea.vmem [#allocation5], 512
        %v999 = vld [vmem:[%s998] sm:$0xff]
        %v1000 = vld [vmem:[%s998 + $0x8] sm:$0xff]
        %v1001 = vld [vmem:[%s998 + $0x10] sm:$0xff]
        %v1002 = vld [vmem:[%s998 + $0x18] sm:$0xff]
        %v1003 = vld [vmem:[%s998 + $0x20] sm:$0xff]
        %v1004 = vld [vmem:[%s998 + $0x28] sm:$0xff]
        %v1005 = vld [vmem:[%s998 + $0x30] sm:$0xff]
        %v1006 = vld [vmem:[%s998 + $0x38] sm:$0xff]
        %v1007 = vsel %vm247, %v995, 0
        %v1010 = vsel %vm247, %v997, 0
        %1012 = vmatprep.subr.mxu0 0.0
        %1013 = vmatpush1.msra.mxu0 0.0
        %1014 = vmatprep.subr.mxu0 0.0
        %1015 = vmatpush1.msra.mxu0 0.0
        %1016 = vmatprep.subr.mxu0 0.0
        %1017 = vmatpush1.msra.mxu0 0.0
        %1018 = vmatprep.subr.mxu0 0.0
        %1019 = vmatpush1.msra.mxu0 0.0
        %1020 = vmatprep.subr.mxu0 0.0
        %1021 = vmatpush1.msra.mxu0 0.0
        %1022 = vmatprep.subr.mxu0 0.0
        %1023 = vmatpush1.msra.mxu0 0.0
        %1024 = vmatprep.subr.mxu0 0.0
        %1025 = vmatpush1.msra.mxu0 0.0
        %1026 = vmatprep.subr.mxu0 0.0
        %1027 = vmatpush1.msra.mxu0 0.0
        %1028 = vmatprep.subr.mxu0 0.0
        %1029 = vmatpush1.msra.mxu0 %v1006
        %1030 = vmatprep.subr.mxu0 0.0
        %1031 = vmatpush1.msra.mxu0 %v1005
        %1032 = vmatprep.subr.mxu0 0.0
        %1033 = vmatpush1.msra.mxu0 %v1004
        %1034 = vmatprep.subr.mxu0 0.0
        %1035 = vmatpush1.msra.mxu0 %v1003
        %1036 = vmatprep.subr.mxu0 0.0
        %1037 = vmatpush1.msra.mxu0 %v1002
        %1038 = vmatprep.subr.mxu0 0.0
        %1039 = vmatpush1.msra.mxu0 %v1001
        %1040 = vmatprep.subr.mxu0 0.0
        %1041 = vmatpush1.msra.mxu0 %v1000
        %1042 = vmatprep.subr.mxu0 0.0
        %1043 = vmatpush1.msra.mxu0 %v999
        %1044 = vmatprep.subr.mxu0 0.0
        %1045 = vmatpush2.msra.mxu0 0.0
        %1046 = vmatprep.subr.mxu0 0.0
        %1047 = vmatpush2.msra.mxu0 0.0
        %1048 = vmatprep.subr.mxu0 0.0
        %1049 = vmatpush2.msra.mxu0 0.0
        %1050 = vmatprep.subr.mxu0 0.0
        %1051 = vmatpush2.msra.mxu0 0.0
        %1052 = vmatprep.subr.mxu0 0.0
        %1053 = vmatpush2.msra.mxu0 0.0
        %1054 = vmatprep.subr.mxu0 0.0
        %1055 = vmatpush2.msra.mxu0 0.0
        %1056 = vmatprep.subr.mxu0 0.0
        %1057 = vmatpush2.msra.mxu0 0.0
        %1058 = vmatprep.subr.mxu0 0.0
        %1059 = vmatpush2.msra.mxu0 0.0
        %1060 = vmatprep.subr.mxu0 0.0
        %1061 = vmatpush2.msra.mxu0 0.0
        %1062 = vmatprep.subr.mxu0 0.0
        %1063 = vmatpush2.msra.mxu0 0.0
        %1064 = vmatprep.subr.mxu0 0.0
        %1065 = vmatpush2.msra.mxu0 0.0
        %1066 = vmatprep.subr.mxu0 0.0
        %1067 = vmatpush2.msra.mxu0 0.0
        %1068 = vmatprep.subr.mxu0 0.0
        %1069 = vmatpush2.msra.mxu0 0.0
        %1070 = vmatprep.subr.mxu0 0.0
        %1071 = vmatpush2.msra.mxu0 0.0
        %1072 = vmatprep.subr.mxu0 0.0
        %1073 = vmatpush2.msra.mxu0 0.0
        %1074 = vmatprep.subr.mxu0 0.0
        %1075 = vmatpush2.msra.mxu0 0.0
        %1076 = vmatprep.mubr.f32.mxu0 0.0
        %1077 = vmatmul.mubr.f32.gmra.mxu0 %v1007
        %v1078 = vpop.f32.mrf.mxu0
        %v1079 = vadd.f32 0.0, %v1078
        %v1080 = vpop.f32.mrf.mxu0
        %1081 = vmatprep.mubr.f32.mxu0 0.0
        %1082 = vmatmul.mubr.f32.gmra.mxu0 %v1010
        %v1083 = vpop.f32.mrf.mxu0
        %v1084 = vadd.f32 0.0, %v1083
        %v1085 = vpop.f32.mrf.mxu0
        %1086 = vdwg.mxu0
        %v1087 = vadd.f32 %v985, %v1079
        %v1088 = vadd.f32 %v990, %v1084
        %s1089 = scalar_lea.vmem [#allocation7], 2
        %v1090 = vld [vmem:[%s1089] sm:$0x1]
        %v1092 = vlaneseq
        %v1093 = vshrl.u32 %v1092, 7
        %v1094 = vsub.s32 0, %v1093
        %v1095 = vrot.slane %v1090, %v1094
        %v1097 = vadd.f32 %v1087, %v1095
        %v1098 = vadd.f32 %v1088, %v1095
        %v1099 = vmax.f32 %v1097, 0.0
        %v1100 = vmax.f32 %v1098, 0.0
        %v1103 = vrot.slane %v1099, 7
        %v1104 = vrot.slane %v1100, 7
        %v1105 = vsel %vm224, %v1103, %v1104
        %v1107 = vsel %vm224, 0.0, %v1103
        %s1108 = scalar_lea.vmem [#allocation5], 576
        %v1109 = vld [vmem:[%s1108] sm:$0xff]
        %v1110 = vld [vmem:[%s1108 + $0x8] sm:$0xff]
        %v1111 = vld [vmem:[%s1108 + $0x10] sm:$0xff]
        %v1112 = vld [vmem:[%s1108 + $0x18] sm:$0xff]
        %v1113 = vld [vmem:[%s1108 + $0x20] sm:$0xff]
        %v1114 = vld [vmem:[%s1108 + $0x28] sm:$0xff]
        %v1115 = vld [vmem:[%s1108 + $0x30] sm:$0xff]
        %v1116 = vld [vmem:[%s1108 + $0x38] sm:$0xff]
        %s1117 = scalar_lea.vmem [#allocation5], 640
        %v1118 = vld [vmem:[%s1117] sm:$0xff]
        %v1119 = vld [vmem:[%s1117 + $0x8] sm:$0xff]
        %v1120 = vld [vmem:[%s1117 + $0x10] sm:$0xff]
        %v1121 = vld [vmem:[%s1117 + $0x18] sm:$0xff]
        %v1122 = vld [vmem:[%s1117 + $0x20] sm:$0xff]
        %v1123 = vld [vmem:[%s1117 + $0x28] sm:$0xff]
        %v1124 = vld [vmem:[%s1117 + $0x30] sm:$0xff]
        %v1125 = vld [vmem:[%s1117 + $0x38] sm:$0xff]
        %v1126 = vsel %vm247, %v1099, 0
        %v1128 = vsel %vm247, %v1100, 0
        %1130 = vmatprep.subr.mxu0 0.0
        %1131 = vmatpush1.msra.mxu0 0.0
        %1132 = vmatprep.subr.mxu0 0.0
        %1133 = vmatpush1.msra.mxu0 0.0
        %1134 = vmatprep.subr.mxu0 0.0
        %1135 = vmatpush1.msra.mxu0 0.0
        %1136 = vmatprep.subr.mxu0 0.0
        %1137 = vmatpush1.msra.mxu0 0.0
        %1138 = vmatprep.subr.mxu0 0.0
        %1139 = vmatpush1.msra.mxu0 0.0
        %1140 = vmatprep.subr.mxu0 0.0
        %1141 = vmatpush1.msra.mxu0 0.0
        %1142 = vmatprep.subr.mxu0 0.0
        %1143 = vmatpush1.msra.mxu0 0.0
        %1144 = vmatprep.subr.mxu0 0.0
        %1145 = vmatpush1.msra.mxu0 0.0
        %1146 = vmatprep.subr.mxu0 0.0
        %1147 = vmatpush1.msra.mxu0 %v1125
        %1148 = vmatprep.subr.mxu0 0.0
        %1149 = vmatpush1.msra.mxu0 %v1124
        %1150 = vmatprep.subr.mxu0 0.0
        %1151 = vmatpush1.msra.mxu0 %v1123
        %1152 = vmatprep.subr.mxu0 0.0
        %1153 = vmatpush1.msra.mxu0 %v1122
        %1154 = vmatprep.subr.mxu0 0.0
        %1155 = vmatpush1.msra.mxu0 %v1121
        %1156 = vmatprep.subr.mxu0 0.0
        %1157 = vmatpush1.msra.mxu0 %v1120
        %1158 = vmatprep.subr.mxu0 0.0
        %1159 = vmatpush1.msra.mxu0 %v1119
        %1160 = vmatprep.subr.mxu0 0.0
        %1161 = vmatpush1.msra.mxu0 %v1118
        %1162 = vmatprep.subr.mxu0 0.0
        %1163 = vmatpush2.msra.mxu0 0.0
        %1164 = vmatprep.subr.mxu0 0.0
        %1165 = vmatpush2.msra.mxu0 0.0
        %1166 = vmatprep.subr.mxu0 0.0
        %1167 = vmatpush2.msra.mxu0 0.0
        %1168 = vmatprep.subr.mxu0 0.0
        %1169 = vmatpush2.msra.mxu0 0.0
        %1170 = vmatprep.subr.mxu0 0.0
        %1171 = vmatpush2.msra.mxu0 0.0
        %1172 = vmatprep.subr.mxu0 0.0
        %1173 = vmatpush2.msra.mxu0 0.0
        %1174 = vmatprep.subr.mxu0 0.0
        %1175 = vmatpush2.msra.mxu0 0.0
        %1176 = vmatprep.subr.mxu0 0.0
        %1177 = vmatpush2.msra.mxu0 0.0
        %1178 = vmatprep.subr.mxu0 0.0
        %1179 = vmatpush2.msra.mxu0 0.0
        %1180 = vmatprep.subr.mxu0 0.0
        %1181 = vmatpush2.msra.mxu0 0.0
        %1182 = vmatprep.subr.mxu0 0.0
        %1183 = vmatpush2.msra.mxu0 0.0
        %1184 = vmatprep.subr.mxu0 0.0
        %1185 = vmatpush2.msra.mxu0 0.0
        %1186 = vmatprep.subr.mxu0 0.0
        %1187 = vmatpush2.msra.mxu0 0.0
        %1188 = vmatprep.subr.mxu0 0.0
        %1189 = vmatpush2.msra.mxu0 0.0
        %1190 = vmatprep.subr.mxu0 0.0
        %1191 = vmatpush2.msra.mxu0 0.0
        %1192 = vmatprep.subr.mxu0 0.0
        %1193 = vmatpush2.msra.mxu0 0.0
        %1194 = vmatprep.mubr.f32.mxu0 0.0
        %1195 = vmatmul.mubr.f32.gmra.mxu0 %v1126
        %v1196 = vpop.f32.mrf.mxu0
        %v1197 = vadd.f32 0.0, %v1196
        %v1198 = vpop.f32.mrf.mxu0
        %1199 = vmatprep.mubr.f32.mxu0 0.0
        %1200 = vmatmul.mubr.f32.gmra.mxu0 %v1128
        %v1201 = vpop.f32.mrf.mxu0
        %v1202 = vadd.f32 0.0, %v1201
        %v1203 = vpop.f32.mrf.mxu0
        %1204 = vdwg.mxu0
        %v1206 = vsel %vm247, %v1107, 0
        %v1208 = vsel %vm247, %v1105, 0
        %1210 = vmatprep.subr.mxu0 0.0
        %1211 = vmatpush1.msra.mxu0 0.0
        %1212 = vmatprep.subr.mxu0 0.0
        %1213 = vmatpush1.msra.mxu0 0.0
        %1214 = vmatprep.subr.mxu0 0.0
        %1215 = vmatpush1.msra.mxu0 0.0
        %1216 = vmatprep.subr.mxu0 0.0
        %1217 = vmatpush1.msra.mxu0 0.0
        %1218 = vmatprep.subr.mxu0 0.0
        %1219 = vmatpush1.msra.mxu0 0.0
        %1220 = vmatprep.subr.mxu0 0.0
        %1221 = vmatpush1.msra.mxu0 0.0
        %1222 = vmatprep.subr.mxu0 0.0
        %1223 = vmatpush1.msra.mxu0 0.0
        %1224 = vmatprep.subr.mxu0 0.0
        %1225 = vmatpush1.msra.mxu0 0.0
        %1226 = vmatprep.subr.mxu0 0.0
        %1227 = vmatpush1.msra.mxu0 %v1116
        %1228 = vmatprep.subr.mxu0 0.0
        %1229 = vmatpush1.msra.mxu0 %v1115
        %1230 = vmatprep.subr.mxu0 0.0
        %1231 = vmatpush1.msra.mxu0 %v1114
        %1232 = vmatprep.subr.mxu0 0.0
        %1233 = vmatpush1.msra.mxu0 %v1113
        %1234 = vmatprep.subr.mxu0 0.0
        %1235 = vmatpush1.msra.mxu0 %v1112
        %1236 = vmatprep.subr.mxu0 0.0
        %1237 = vmatpush1.msra.mxu0 %v1111
        %1238 = vmatprep.subr.mxu0 0.0
        %1239 = vmatpush1.msra.mxu0 %v1110
        %1240 = vmatprep.subr.mxu0 0.0
        %1241 = vmatpush1.msra.mxu0 %v1109
        %1242 = vmatprep.subr.mxu0 0.0
        %1243 = vmatpush2.msra.mxu0 0.0
        %1244 = vmatprep.subr.mxu0 0.0
        %1245 = vmatpush2.msra.mxu0 0.0
        %1246 = vmatprep.subr.mxu0 0.0
        %1247 = vmatpush2.msra.mxu0 0.0
        %1248 = vmatprep.subr.mxu0 0.0
        %1249 = vmatpush2.msra.mxu0 0.0
        %1250 = vmatprep.subr.mxu0 0.0
        %1251 = vmatpush2.msra.mxu0 0.0
        %1252 = vmatprep.subr.mxu0 0.0
        %1253 = vmatpush2.msra.mxu0 0.0
        %1254 = vmatprep.subr.mxu0 0.0
        %1255 = vmatpush2.msra.mxu0 0.0
        %1256 = vmatprep.subr.mxu0 0.0
        %1257 = vmatpush2.msra.mxu0 0.0
        %1258 = vmatprep.subr.mxu0 0.0
        %1259 = vmatpush2.msra.mxu0 0.0
        %1260 = vmatprep.subr.mxu0 0.0
        %1261 = vmatpush2.msra.mxu0 0.0
        %1262 = vmatprep.subr.mxu0 0.0
        %1263 = vmatpush2.msra.mxu0 0.0
        %1264 = vmatprep.subr.mxu0 0.0
        %1265 = vmatpush2.msra.mxu0 0.0
        %1266 = vmatprep.subr.mxu0 0.0
        %1267 = vmatpush2.msra.mxu0 0.0
        %1268 = vmatprep.subr.mxu0 0.0
        %1269 = vmatpush2.msra.mxu0 0.0
        %1270 = vmatprep.subr.mxu0 0.0
        %1271 = vmatpush2.msra.mxu0 0.0
        %1272 = vmatprep.subr.mxu0 0.0
        %1273 = vmatpush2.msra.mxu0 0.0
        %1274 = vmatprep.mubr.f32.mxu0 0.0
        %1275 = vmatmul.mubr.f32.gmra.mxu0 %v1206
        %v1276 = vpop.f32.mrf.mxu0
        %v1277 = vadd.f32 %v1197, %v1276
        %v1278 = vpop.f32.mrf.mxu0
        %1279 = vmatprep.mubr.f32.mxu0 0.0
        %1280 = vmatmul.mubr.f32.gmra.mxu0 %v1208
        %v1281 = vpop.f32.mrf.mxu0
        %v1282 = vadd.f32 %v1202, %v1281
        %v1283 = vpop.f32.mrf.mxu0
        %1284 = vdwg.mxu0
        %v1285 = vrot.slane %v1099, 1
        %v1286 = vrot.slane %v1100, 1
        %v1287 = vsel %vm407, %v1285, %v1286
        %v1289 = vsel %vm407, %v1286, 0.0
        %s1290 = scalar_lea.vmem [#allocation5], 704
        %v1291 = vld [vmem:[%s1290] sm:$0xff]
        %v1292 = vld [vmem:[%s1290 + $0x8] sm:$0xff]
        %v1293 = vld [vmem:[%s1290 + $0x10] sm:$0xff]
        %v1294 = vld [vmem:[%s1290 + $0x18] sm:$0xff]
        %v1295 = vld [vmem:[%s1290 + $0x20] sm:$0xff]
        %v1296 = vld [vmem:[%s1290 + $0x28] sm:$0xff]
        %v1297 = vld [vmem:[%s1290 + $0x30] sm:$0xff]
        %v1298 = vld [vmem:[%s1290 + $0x38] sm:$0xff]
        %v1299 = vsel %vm247, %v1287, 0
        %v1302 = vsel %vm247, %v1289, 0
        %1304 = vmatprep.subr.mxu0 0.0
        %1305 = vmatpush1.msra.mxu0 0.0
        %1306 = vmatprep.subr.mxu0 0.0
        %1307 = vmatpush1.msra.mxu0 0.0
        %1308 = vmatprep.subr.mxu0 0.0
        %1309 = vmatpush1.msra.mxu0 0.0
        %1310 = vmatprep.subr.mxu0 0.0
        %1311 = vmatpush1.msra.mxu0 0.0
        %1312 = vmatprep.subr.mxu0 0.0
        %1313 = vmatpush1.msra.mxu0 0.0
        %1314 = vmatprep.subr.mxu0 0.0
        %1315 = vmatpush1.msra.mxu0 0.0
        %1316 = vmatprep.subr.mxu0 0.0
        %1317 = vmatpush1.msra.mxu0 0.0
        %1318 = vmatprep.subr.mxu0 0.0
        %1319 = vmatpush1.msra.mxu0 0.0
        %1320 = vmatprep.subr.mxu0 0.0
        %1321 = vmatpush1.msra.mxu0 %v1298
        %1322 = vmatprep.subr.mxu0 0.0
        %1323 = vmatpush1.msra.mxu0 %v1297
        %1324 = vmatprep.subr.mxu0 0.0
        %1325 = vmatpush1.msra.mxu0 %v1296
        %1326 = vmatprep.subr.mxu0 0.0
        %1327 = vmatpush1.msra.mxu0 %v1295
        %1328 = vmatprep.subr.mxu0 0.0
        %1329 = vmatpush1.msra.mxu0 %v1294
        %1330 = vmatprep.subr.mxu0 0.0
        %1331 = vmatpush1.msra.mxu0 %v1293
        %1332 = vmatprep.subr.mxu0 0.0
        %1333 = vmatpush1.msra.mxu0 %v1292
        %1334 = vmatprep.subr.mxu0 0.0
        %1335 = vmatpush1.msra.mxu0 %v1291
        %1336 = vmatprep.subr.mxu0 0.0
        %1337 = vmatpush2.msra.mxu0 0.0
        %1338 = vmatprep.subr.mxu0 0.0
        %1339 = vmatpush2.msra.mxu0 0.0
        %1340 = vmatprep.subr.mxu0 0.0
        %1341 = vmatpush2.msra.mxu0 0.0
        %1342 = vmatprep.subr.mxu0 0.0
        %1343 = vmatpush2.msra.mxu0 0.0
        %1344 = vmatprep.subr.mxu0 0.0
        %1345 = vmatpush2.msra.mxu0 0.0
        %1346 = vmatprep.subr.mxu0 0.0
        %1347 = vmatpush2.msra.mxu0 0.0
        %1348 = vmatprep.subr.mxu0 0.0
        %1349 = vmatpush2.msra.mxu0 0.0
        %1350 = vmatprep.subr.mxu0 0.0
        %1351 = vmatpush2.msra.mxu0 0.0
        %1352 = vmatprep.subr.mxu0 0.0
        %1353 = vmatpush2.msra.mxu0 0.0
        %1354 = vmatprep.subr.mxu0 0.0
        %1355 = vmatpush2.msra.mxu0 0.0
        %1356 = vmatprep.subr.mxu0 0.0
        %1357 = vmatpush2.msra.mxu0 0.0
        %1358 = vmatprep.subr.mxu0 0.0
        %1359 = vmatpush2.msra.mxu0 0.0
        %1360 = vmatprep.subr.mxu0 0.0
        %1361 = vmatpush2.msra.mxu0 0.0
        %1362 = vmatprep.subr.mxu0 0.0
        %1363 = vmatpush2.msra.mxu0 0.0
        %1364 = vmatprep.subr.mxu0 0.0
        %1365 = vmatpush2.msra.mxu0 0.0
        %1366 = vmatprep.subr.mxu0 0.0
        %1367 = vmatpush2.msra.mxu0 0.0
        %1368 = vmatprep.mubr.f32.mxu0 0.0
        %1369 = vmatmul.mubr.f32.gmra.mxu0 %v1299
        %v1370 = vpop.f32.mrf.mxu0
        %v1371 = vadd.f32 0.0, %v1370
        %v1372 = vpop.f32.mrf.mxu0
        %1373 = vmatprep.mubr.f32.mxu0 0.0
        %1374 = vmatmul.mubr.f32.gmra.mxu0 %v1302
        %v1375 = vpop.f32.mrf.mxu0
        %v1376 = vadd.f32 0.0, %v1375
        %v1377 = vpop.f32.mrf.mxu0
        %1378 = vdwg.mxu0
        %v1379 = vadd.f32 %v1277, %v1371
        %v1380 = vadd.f32 %v1282, %v1376
        %s1381 = scalar_lea.vmem [#allocation7], 3
        %v1382 = vld [vmem:[%s1381] sm:$0x1]
        %v1384 = vlaneseq
        %v1385 = vshrl.u32 %v1384, 7
        %v1386 = vsub.s32 0, %v1385
        %v1387 = vrot.slane %v1382, %v1386
        %v1389 = vadd.f32 %v1379, %v1387
        %v1390 = vadd.f32 %v1380, %v1387
        %v1391 = vadd.f32 %v1389, %v805
        %v1392 = vadd.f32 %v1390, %v806
        %v1393 = vmax.f32 %v1391, 0.0
        %v1394 = vmax.f32 %v1392, 0.0
        %v1397 = vrot.slane %v1393, 7
        %v1398 = vrot.slane %v1394, 7
        %v1399 = vsel %vm224, %v1397, %v1398
        %v1401 = vsel %vm224, 0.0, %v1397
        %s1402 = scalar_lea.vmem [#allocation5], 768
        %v1403 = vld [vmem:[%s1402] sm:$0xff]
        %v1404 = vld [vmem:[%s1402 + $0x8] sm:$0xff]
        %v1405 = vld [vmem:[%s1402 + $0x10] sm:$0xff]
        %v1406 = vld [vmem:[%s1402 + $0x18] sm:$0xff]
        %v1407 = vld [vmem:[%s1402 + $0x20] sm:$0xff]
        %v1408 = vld [vmem:[%s1402 + $0x28] sm:$0xff]
        %v1409 = vld [vmem:[%s1402 + $0x30] sm:$0xff]
        %v1410 = vld [vmem:[%s1402 + $0x38] sm:$0xff]
        %s1411 = scalar_lea.vmem [#allocation5], 832
        %v1412 = vld [vmem:[%s1411] sm:$0xff]
        %v1413 = vld [vmem:[%s1411 + $0x8] sm:$0xff]
        %v1414 = vld [vmem:[%s1411 + $0x10] sm:$0xff]
        %v1415 = vld [vmem:[%s1411 + $0x18] sm:$0xff]
        %v1416 = vld [vmem:[%s1411 + $0x20] sm:$0xff]
        %v1417 = vld [vmem:[%s1411 + $0x28] sm:$0xff]
        %v1418 = vld [vmem:[%s1411 + $0x30] sm:$0xff]
        %v1419 = vld [vmem:[%s1411 + $0x38] sm:$0xff]
        %v1420 = vsel %vm247, %v1393, 0
        %v1422 = vsel %vm247, %v1394, 0
        %1424 = vmatprep.subr.mxu0 0.0
        %1425 = vmatpush1.msra.mxu0 0.0
        %1426 = vmatprep.subr.mxu0 0.0
        %1427 = vmatpush1.msra.mxu0 0.0
        %1428 = vmatprep.subr.mxu0 0.0
        %1429 = vmatpush1.msra.mxu0 0.0
        %1430 = vmatprep.subr.mxu0 0.0
        %1431 = vmatpush1.msra.mxu0 0.0
        %1432 = vmatprep.subr.mxu0 0.0
        %1433 = vmatpush1.msra.mxu0 0.0
        %1434 = vmatprep.subr.mxu0 0.0
        %1435 = vmatpush1.msra.mxu0 0.0
        %1436 = vmatprep.subr.mxu0 0.0
        %1437 = vmatpush1.msra.mxu0 0.0
        %1438 = vmatprep.subr.mxu0 0.0
        %1439 = vmatpush1.msra.mxu0 0.0
        %1440 = vmatprep.subr.mxu0 0.0
        %1441 = vmatpush1.msra.mxu0 %v1419
        %1442 = vmatprep.subr.mxu0 0.0
        %1443 = vmatpush1.msra.mxu0 %v1418
        %1444 = vmatprep.subr.mxu0 0.0
        %1445 = vmatpush1.msra.mxu0 %v1417
        %1446 = vmatprep.subr.mxu0 0.0
        %1447 = vmatpush1.msra.mxu0 %v1416
        %1448 = vmatprep.subr.mxu0 0.0
        %1449 = vmatpush1.msra.mxu0 %v1415
        %1450 = vmatprep.subr.mxu0 0.0
        %1451 = vmatpush1.msra.mxu0 %v1414
        %1452 = vmatprep.subr.mxu0 0.0
        %1453 = vmatpush1.msra.mxu0 %v1413
        %1454 = vmatprep.subr.mxu0 0.0
        %1455 = vmatpush1.msra.mxu0 %v1412
        %1456 = vmatprep.subr.mxu0 0.0
        %1457 = vmatpush2.msra.mxu0 0.0
        %1458 = vmatprep.subr.mxu0 0.0
        %1459 = vmatpush2.msra.mxu0 0.0
        %1460 = vmatprep.subr.mxu0 0.0
        %1461 = vmatpush2.msra.mxu0 0.0
        %1462 = vmatprep.subr.mxu0 0.0
        %1463 = vmatpush2.msra.mxu0 0.0
        %1464 = vmatprep.subr.mxu0 0.0
        %1465 = vmatpush2.msra.mxu0 0.0
        %1466 = vmatprep.subr.mxu0 0.0
        %1467 = vmatpush2.msra.mxu0 0.0
        %1468 = vmatprep.subr.mxu0 0.0
        %1469 = vmatpush2.msra.mxu0 0.0
        %1470 = vmatprep.subr.mxu0 0.0
        %1471 = vmatpush2.msra.mxu0 0.0
        %1472 = vmatprep.subr.mxu0 0.0
        %1473 = vmatpush2.msra.mxu0 0.0
        %1474 = vmatprep.subr.mxu0 0.0
        %1475 = vmatpush2.msra.mxu0 0.0
        %1476 = vmatprep.subr.mxu0 0.0
        %1477 = vmatpush2.msra.mxu0 0.0
        %1478 = vmatprep.subr.mxu0 0.0
        %1479 = vmatpush2.msra.mxu0 0.0
        %1480 = vmatprep.subr.mxu0 0.0
        %1481 = vmatpush2.msra.mxu0 0.0
        %1482 = vmatprep.subr.mxu0 0.0
        %1483 = vmatpush2.msra.mxu0 0.0
        %1484 = vmatprep.subr.mxu0 0.0
        %1485 = vmatpush2.msra.mxu0 0.0
        %1486 = vmatprep.subr.mxu0 0.0
        %1487 = vmatpush2.msra.mxu0 0.0
        %1488 = vmatprep.mubr.f32.mxu0 0.0
        %1489 = vmatmul.mubr.f32.gmra.mxu0 %v1420
        %v1490 = vpop.f32.mrf.mxu0
        %v1491 = vadd.f32 0.0, %v1490
        %v1492 = vpop.f32.mrf.mxu0
        %1493 = vmatprep.mubr.f32.mxu0 0.0
        %1494 = vmatmul.mubr.f32.gmra.mxu0 %v1422
        %v1495 = vpop.f32.mrf.mxu0
        %v1496 = vadd.f32 0.0, %v1495
        %v1497 = vpop.f32.mrf.mxu0
        %1498 = vdwg.mxu0
        %v1500 = vsel %vm247, %v1401, 0
        %v1502 = vsel %vm247, %v1399, 0
        %1504 = vmatprep.subr.mxu0 0.0
        %1505 = vmatpush1.msra.mxu0 0.0
        %1506 = vmatprep.subr.mxu0 0.0
        %1507 = vmatpush1.msra.mxu0 0.0
        %1508 = vmatprep.subr.mxu0 0.0
        %1509 = vmatpush1.msra.mxu0 0.0
        %1510 = vmatprep.subr.mxu0 0.0
        %1511 = vmatpush1.msra.mxu0 0.0
        %1512 = vmatprep.subr.mxu0 0.0
        %1513 = vmatpush1.msra.mxu0 0.0
        %1514 = vmatprep.subr.mxu0 0.0
        %1515 = vmatpush1.msra.mxu0 0.0
        %1516 = vmatprep.subr.mxu0 0.0
        %1517 = vmatpush1.msra.mxu0 0.0
        %1518 = vmatprep.subr.mxu0 0.0
        %1519 = vmatpush1.msra.mxu0 0.0
        %1520 = vmatprep.subr.mxu0 0.0
        %1521 = vmatpush1.msra.mxu0 %v1410
        %1522 = vmatprep.subr.mxu0 0.0
        %1523 = vmatpush1.msra.mxu0 %v1409
        %1524 = vmatprep.subr.mxu0 0.0
        %1525 = vmatpush1.msra.mxu0 %v1408
        %1526 = vmatprep.subr.mxu0 0.0
        %1527 = vmatpush1.msra.mxu0 %v1407
        %1528 = vmatprep.subr.mxu0 0.0
        %1529 = vmatpush1.msra.mxu0 %v1406
        %1530 = vmatprep.subr.mxu0 0.0
        %1531 = vmatpush1.msra.mxu0 %v1405
        %1532 = vmatprep.subr.mxu0 0.0
        %1533 = vmatpush1.msra.mxu0 %v1404
        %1534 = vmatprep.subr.mxu0 0.0
        %1535 = vmatpush1.msra.mxu0 %v1403
        %1536 = vmatprep.subr.mxu0 0.0
        %1537 = vmatpush2.msra.mxu0 0.0
        %1538 = vmatprep.subr.mxu0 0.0
        %1539 = vmatpush2.msra.mxu0 0.0
        %1540 = vmatprep.subr.mxu0 0.0
        %1541 = vmatpush2.msra.mxu0 0.0
        %1542 = vmatprep.subr.mxu0 0.0
        %1543 = vmatpush2.msra.mxu0 0.0
        %1544 = vmatprep.subr.mxu0 0.0
        %1545 = vmatpush2.msra.mxu0 0.0
        %1546 = vmatprep.subr.mxu0 0.0
        %1547 = vmatpush2.msra.mxu0 0.0
        %1548 = vmatprep.subr.mxu0 0.0
        %1549 = vmatpush2.msra.mxu0 0.0
        %1550 = vmatprep.subr.mxu0 0.0
        %1551 = vmatpush2.msra.mxu0 0.0
        %1552 = vmatprep.subr.mxu0 0.0
        %1553 = vmatpush2.msra.mxu0 0.0
        %1554 = vmatprep.subr.mxu0 0.0
        %1555 = vmatpush2.msra.mxu0 0.0
        %1556 = vmatprep.subr.mxu0 0.0
        %1557 = vmatpush2.msra.mxu0 0.0
        %1558 = vmatprep.subr.mxu0 0.0
        %1559 = vmatpush2.msra.mxu0 0.0
        %1560 = vmatprep.subr.mxu0 0.0
        %1561 = vmatpush2.msra.mxu0 0.0
        %1562 = vmatprep.subr.mxu0 0.0
        %1563 = vmatpush2.msra.mxu0 0.0
        %1564 = vmatprep.subr.mxu0 0.0
        %1565 = vmatpush2.msra.mxu0 0.0
        %1566 = vmatprep.subr.mxu0 0.0
        %1567 = vmatpush2.msra.mxu0 0.0
        %1568 = vmatprep.mubr.f32.mxu0 0.0
        %1569 = vmatmul.mubr.f32.gmra.mxu0 %v1500
        %v1570 = vpop.f32.mrf.mxu0
        %v1571 = vadd.f32 %v1491, %v1570
        %v1572 = vpop.f32.mrf.mxu0
        %1573 = vmatprep.mubr.f32.mxu0 0.0
        %1574 = vmatmul.mubr.f32.gmra.mxu0 %v1502
        %v1575 = vpop.f32.mrf.mxu0
        %v1576 = vadd.f32 %v1496, %v1575
        %v1577 = vpop.f32.mrf.mxu0
        %1578 = vdwg.mxu0
        %v1579 = vrot.slane %v1393, 1
        %v1580 = vrot.slane %v1394, 1
        %v1581 = vsel %vm407, %v1579, %v1580
        %v1583 = vsel %vm407, %v1580, 0.0
        %s1584 = scalar_lea.vmem [#allocation5], 896
        %v1585 = vld [vmem:[%s1584] sm:$0xff]
        %v1586 = vld [vmem:[%s1584 + $0x8] sm:$0xff]
        %v1587 = vld [vmem:[%s1584 + $0x10] sm:$0xff]
        %v1588 = vld [vmem:[%s1584 + $0x18] sm:$0xff]
        %v1589 = vld [vmem:[%s1584 + $0x20] sm:$0xff]
        %v1590 = vld [vmem:[%s1584 + $0x28] sm:$0xff]
        %v1591 = vld [vmem:[%s1584 + $0x30] sm:$0xff]
        %v1592 = vld [vmem:[%s1584 + $0x38] sm:$0xff]
        %v1593 = vsel %vm247, %v1581, 0
        %v1596 = vsel %vm247, %v1583, 0
        %1598 = vmatprep.subr.mxu0 0.0
        %1599 = vmatpush1.msra.mxu0 0.0
        %1600 = vmatprep.subr.mxu0 0.0
        %1601 = vmatpush1.msra.mxu0 0.0
        %1602 = vmatprep.subr.mxu0 0.0
        %1603 = vmatpush1.msra.mxu0 0.0
        %1604 = vmatprep.subr.mxu0 0.0
        %1605 = vmatpush1.msra.mxu0 0.0
        %1606 = vmatprep.subr.mxu0 0.0
        %1607 = vmatpush1.msra.mxu0 0.0
        %1608 = vmatprep.subr.mxu0 0.0
        %1609 = vmatpush1.msra.mxu0 0.0
        %1610 = vmatprep.subr.mxu0 0.0
        %1611 = vmatpush1.msra.mxu0 0.0
        %1612 = vmatprep.subr.mxu0 0.0
        %1613 = vmatpush1.msra.mxu0 0.0
        %1614 = vmatprep.subr.mxu0 0.0
        %1615 = vmatpush1.msra.mxu0 %v1592
        %1616 = vmatprep.subr.mxu0 0.0
        %1617 = vmatpush1.msra.mxu0 %v1591
        %1618 = vmatprep.subr.mxu0 0.0
        %1619 = vmatpush1.msra.mxu0 %v1590
        %1620 = vmatprep.subr.mxu0 0.0
        %1621 = vmatpush1.msra.mxu0 %v1589
        %1622 = vmatprep.subr.mxu0 0.0
        %1623 = vmatpush1.msra.mxu0 %v1588
        %1624 = vmatprep.subr.mxu0 0.0
        %1625 = vmatpush1.msra.mxu0 %v1587
        %1626 = vmatprep.subr.mxu0 0.0
        %1627 = vmatpush1.msra.mxu0 %v1586
        %1628 = vmatprep.subr.mxu0 0.0
        %1629 = vmatpush1.msra.mxu0 %v1585
        %1630 = vmatprep.subr.mxu0 0.0
        %1631 = vmatpush2.msra.mxu0 0.0
        %1632 = vmatprep.subr.mxu0 0.0
        %1633 = vmatpush2.msra.mxu0 0.0
        %1634 = vmatprep.subr.mxu0 0.0
        %1635 = vmatpush2.msra.mxu0 0.0
        %1636 = vmatprep.subr.mxu0 0.0
        %1637 = vmatpush2.msra.mxu0 0.0
        %1638 = vmatprep.subr.mxu0 0.0
        %1639 = vmatpush2.msra.mxu0 0.0
        %1640 = vmatprep.subr.mxu0 0.0
        %1641 = vmatpush2.msra.mxu0 0.0
        %1642 = vmatprep.subr.mxu0 0.0
        %1643 = vmatpush2.msra.mxu0 0.0
        %1644 = vmatprep.subr.mxu0 0.0
        %1645 = vmatpush2.msra.mxu0 0.0
        %1646 = vmatprep.subr.mxu0 0.0
        %1647 = vmatpush2.msra.mxu0 0.0
        %1648 = vmatprep.subr.mxu0 0.0
        %1649 = vmatpush2.msra.mxu0 0.0
        %1650 = vmatprep.subr.mxu0 0.0
        %1651 = vmatpush2.msra.mxu0 0.0
        %1652 = vmatprep.subr.mxu0 0.0
        %1653 = vmatpush2.msra.mxu0 0.0
        %1654 = vmatprep.subr.mxu0 0.0
        %1655 = vmatpush2.msra.mxu0 0.0
        %1656 = vmatprep.subr.mxu0 0.0
        %1657 = vmatpush2.msra.mxu0 0.0
        %1658 = vmatprep.subr.mxu0 0.0
        %1659 = vmatpush2.msra.mxu0 0.0
        %1660 = vmatprep.subr.mxu0 0.0
        %1661 = vmatpush2.msra.mxu0 0.0
        %1662 = vmatprep.mubr.f32.mxu0 0.0
        %1663 = vmatmul.mubr.f32.gmra.mxu0 %v1593
        %v1664 = vpop.f32.mrf.mxu0
        %v1665 = vadd.f32 0.0, %v1664
        %v1666 = vpop.f32.mrf.mxu0
        %1667 = vmatprep.mubr.f32.mxu0 0.0
        %1668 = vmatmul.mubr.f32.gmra.mxu0 %v1596
        %v1669 = vpop.f32.mrf.mxu0
        %v1670 = vadd.f32 0.0, %v1669
        %v1671 = vpop.f32.mrf.mxu0
        %1672 = vdwg.mxu0
        %v1673 = vadd.f32 %v1571, %v1665
        %v1674 = vadd.f32 %v1576, %v1670
        %s1675 = scalar_lea.vmem [#allocation7], 4
        %v1676 = vld [vmem:[%s1675] sm:$0x1]
        %v1678 = vlaneseq
        %v1679 = vshrl.u32 %v1678, 7
        %v1680 = vsub.s32 0, %v1679
        %v1681 = vrot.slane %v1676, %v1680
        %v1683 = vadd.f32 %v1673, %v1681
        %v1684 = vadd.f32 %v1674, %v1681
        %v1685 = vmax.f32 %v1683, 0.0
        %v1686 = vmax.f32 %v1684, 0.0
        %v1689 = vrot.slane %v1685, 7
        %v1690 = vrot.slane %v1686, 7
        %v1691 = vsel %vm224, %v1689, %v1690
        %v1693 = vsel %vm224, 0.0, %v1689
        %s1694 = scalar_lea.vmem [#allocation5], 960
        %v1695 = vld [vmem:[%s1694] sm:$0xff]
        %v1696 = vld [vmem:[%s1694 + $0x8] sm:$0xff]
        %v1697 = vld [vmem:[%s1694 + $0x10] sm:$0xff]
        %v1698 = vld [vmem:[%s1694 + $0x18] sm:$0xff]
        %v1699 = vld [vmem:[%s1694 + $0x20] sm:$0xff]
        %v1700 = vld [vmem:[%s1694 + $0x28] sm:$0xff]
        %v1701 = vld [vmem:[%s1694 + $0x30] sm:$0xff]
        %v1702 = vld [vmem:[%s1694 + $0x38] sm:$0xff]
        %s1703 = scalar_lea.vmem [#allocation5], 1024
        %v1704 = vld [vmem:[%s1703] sm:$0xff]
        %v1705 = vld [vmem:[%s1703 + $0x8] sm:$0xff]
        %v1706 = vld [vmem:[%s1703 + $0x10] sm:$0xff]
        %v1707 = vld [vmem:[%s1703 + $0x18] sm:$0xff]
        %v1708 = vld [vmem:[%s1703 + $0x20] sm:$0xff]
        %v1709 = vld [vmem:[%s1703 + $0x28] sm:$0xff]
        %v1710 = vld [vmem:[%s1703 + $0x30] sm:$0xff]
        %v1711 = vld [vmem:[%s1703 + $0x38] sm:$0xff]
        %v1712 = vsel %vm247, %v1685, 0
        %v1714 = vsel %vm247, %v1686, 0
        %1716 = vmatprep.subr.mxu0 0.0
        %1717 = vmatpush1.msra.mxu0 0.0
        %1718 = vmatprep.subr.mxu0 0.0
        %1719 = vmatpush1.msra.mxu0 0.0
        %1720 = vmatprep.subr.mxu0 0.0
        %1721 = vmatpush1.msra.mxu0 0.0
        %1722 = vmatprep.subr.mxu0 0.0
        %1723 = vmatpush1.msra.mxu0 0.0
        %1724 = vmatprep.subr.mxu0 0.0
        %1725 = vmatpush1.msra.mxu0 0.0
        %1726 = vmatprep.subr.mxu0 0.0
        %1727 = vmatpush1.msra.mxu0 0.0
        %1728 = vmatprep.subr.mxu0 0.0
        %1729 = vmatpush1.msra.mxu0 0.0
        %1730 = vmatprep.subr.mxu0 0.0
        %1731 = vmatpush1.msra.mxu0 0.0
        %1732 = vmatprep.subr.mxu0 0.0
        %1733 = vmatpush1.msra.mxu0 %v1711
        %1734 = vmatprep.subr.mxu0 0.0
        %1735 = vmatpush1.msra.mxu0 %v1710
        %1736 = vmatprep.subr.mxu0 0.0
        %1737 = vmatpush1.msra.mxu0 %v1709
        %1738 = vmatprep.subr.mxu0 0.0
        %1739 = vmatpush1.msra.mxu0 %v1708
        %1740 = vmatprep.subr.mxu0 0.0
        %1741 = vmatpush1.msra.mxu0 %v1707
        %1742 = vmatprep.subr.mxu0 0.0
        %1743 = vmatpush1.msra.mxu0 %v1706
        %1744 = vmatprep.subr.mxu0 0.0
        %1745 = vmatpush1.msra.mxu0 %v1705
        %1746 = vmatprep.subr.mxu0 0.0
        %1747 = vmatpush1.msra.mxu0 %v1704
        %1748 = vmatprep.subr.mxu0 0.0
        %1749 = vmatpush2.msra.mxu0 0.0
        %1750 = vmatprep.subr.mxu0 0.0
        %1751 = vmatpush2.msra.mxu0 0.0
        %1752 = vmatprep.subr.mxu0 0.0
        %1753 = vmatpush2.msra.mxu0 0.0
        %1754 = vmatprep.subr.mxu0 0.0
        %1755 = vmatpush2.msra.mxu0 0.0
        %1756 = vmatprep.subr.mxu0 0.0
        %1757 = vmatpush2.msra.mxu0 0.0
        %1758 = vmatprep.subr.mxu0 0.0
        %1759 = vmatpush2.msra.mxu0 0.0
        %1760 = vmatprep.subr.mxu0 0.0
        %1761 = vmatpush2.msra.mxu0 0.0
        %1762 = vmatprep.subr.mxu0 0.0
        %1763 = vmatpush2.msra.mxu0 0.0
        %1764 = vmatprep.subr.mxu0 0.0
        %1765 = vmatpush2.msra.mxu0 0.0
        %1766 = vmatprep.subr.mxu0 0.0
        %1767 = vmatpush2.msra.mxu0 0.0
        %1768 = vmatprep.subr.mxu0 0.0
        %1769 = vmatpush2.msra.mxu0 0.0
        %1770 = vmatprep.subr.mxu0 0.0
        %1771 = vmatpush2.msra.mxu0 0.0
        %1772 = vmatprep.subr.mxu0 0.0
        %1773 = vmatpush2.msra.mxu0 0.0
        %1774 = vmatprep.subr.mxu0 0.0
        %1775 = vmatpush2.msra.mxu0 0.0
        %1776 = vmatprep.subr.mxu0 0.0
        %1777 = vmatpush2.msra.mxu0 0.0
        %1778 = vmatprep.subr.mxu0 0.0
        %1779 = vmatpush2.msra.mxu0 0.0
        %1780 = vmatprep.mubr.f32.mxu0 0.0
        %1781 = vmatmul.mubr.f32.gmra.mxu0 %v1712
        %v1782 = vpop.f32.mrf.mxu0
        %v1783 = vadd.f32 0.0, %v1782
        %v1784 = vpop.f32.mrf.mxu0
        %1785 = vmatprep.mubr.f32.mxu0 0.0
        %1786 = vmatmul.mubr.f32.gmra.mxu0 %v1714
        %v1787 = vpop.f32.mrf.mxu0
        %v1788 = vadd.f32 0.0, %v1787
        %v1789 = vpop.f32.mrf.mxu0
        %1790 = vdwg.mxu0
        %v1792 = vsel %vm247, %v1693, 0
        %v1794 = vsel %vm247, %v1691, 0
        %1796 = vmatprep.subr.mxu0 0.0
        %1797 = vmatpush1.msra.mxu0 0.0
        %1798 = vmatprep.subr.mxu0 0.0
        %1799 = vmatpush1.msra.mxu0 0.0
        %1800 = vmatprep.subr.mxu0 0.0
        %1801 = vmatpush1.msra.mxu0 0.0
        %1802 = vmatprep.subr.mxu0 0.0
        %1803 = vmatpush1.msra.mxu0 0.0
        %1804 = vmatprep.subr.mxu0 0.0
        %1805 = vmatpush1.msra.mxu0 0.0
        %1806 = vmatprep.subr.mxu0 0.0
        %1807 = vmatpush1.msra.mxu0 0.0
        %1808 = vmatprep.subr.mxu0 0.0
        %1809 = vmatpush1.msra.mxu0 0.0
        %1810 = vmatprep.subr.mxu0 0.0
        %1811 = vmatpush1.msra.mxu0 0.0
        %1812 = vmatprep.subr.mxu0 0.0
        %1813 = vmatpush1.msra.mxu0 %v1702
        %1814 = vmatprep.subr.mxu0 0.0
        %1815 = vmatpush1.msra.mxu0 %v1701
        %1816 = vmatprep.subr.mxu0 0.0
        %1817 = vmatpush1.msra.mxu0 %v1700
        %1818 = vmatprep.subr.mxu0 0.0
        %1819 = vmatpush1.msra.mxu0 %v1699
        %1820 = vmatprep.subr.mxu0 0.0
        %1821 = vmatpush1.msra.mxu0 %v1698
        %1822 = vmatprep.subr.mxu0 0.0
        %1823 = vmatpush1.msra.mxu0 %v1697
        %1824 = vmatprep.subr.mxu0 0.0
        %1825 = vmatpush1.msra.mxu0 %v1696
        %1826 = vmatprep.subr.mxu0 0.0
        %1827 = vmatpush1.msra.mxu0 %v1695
        %1828 = vmatprep.subr.mxu0 0.0
        %1829 = vmatpush2.msra.mxu0 0.0
        %1830 = vmatprep.subr.mxu0 0.0
        %1831 = vmatpush2.msra.mxu0 0.0
        %1832 = vmatprep.subr.mxu0 0.0
        %1833 = vmatpush2.msra.mxu0 0.0
        %1834 = vmatprep.subr.mxu0 0.0
        %1835 = vmatpush2.msra.mxu0 0.0
        %1836 = vmatprep.subr.mxu0 0.0
        %1837 = vmatpush2.msra.mxu0 0.0
        %1838 = vmatprep.subr.mxu0 0.0
        %1839 = vmatpush2.msra.mxu0 0.0
        %1840 = vmatprep.subr.mxu0 0.0
        %1841 = vmatpush2.msra.mxu0 0.0
        %1842 = vmatprep.subr.mxu0 0.0
        %1843 = vmatpush2.msra.mxu0 0.0
        %1844 = vmatprep.subr.mxu0 0.0
        %1845 = vmatpush2.msra.mxu0 0.0
        %1846 = vmatprep.subr.mxu0 0.0
        %1847 = vmatpush2.msra.mxu0 0.0
        %1848 = vmatprep.subr.mxu0 0.0
        %1849 = vmatpush2.msra.mxu0 0.0
        %1850 = vmatprep.subr.mxu0 0.0
        %1851 = vmatpush2.msra.mxu0 0.0
        %1852 = vmatprep.subr.mxu0 0.0
        %1853 = vmatpush2.msra.mxu0 0.0
        %1854 = vmatprep.subr.mxu0 0.0
        %1855 = vmatpush2.msra.mxu0 0.0
        %1856 = vmatprep.subr.mxu0 0.0
        %1857 = vmatpush2.msra.mxu0 0.0
        %1858 = vmatprep.subr.mxu0 0.0
        %1859 = vmatpush2.msra.mxu0 0.0
        %1860 = vmatprep.mubr.f32.mxu0 0.0
        %1861 = vmatmul.mubr.f32.gmra.mxu0 %v1792
        %v1862 = vpop.f32.mrf.mxu0
        %v1863 = vadd.f32 %v1783, %v1862
        %v1864 = vpop.f32.mrf.mxu0
        %1865 = vmatprep.mubr.f32.mxu0 0.0
        %1866 = vmatmul.mubr.f32.gmra.mxu0 %v1794
        %v1867 = vpop.f32.mrf.mxu0
        %v1868 = vadd.f32 %v1788, %v1867
        %v1869 = vpop.f32.mrf.mxu0
        %1870 = vdwg.mxu0
        %v1871 = vrot.slane %v1685, 1
        %v1872 = vrot.slane %v1686, 1
        %v1873 = vsel %vm407, %v1871, %v1872
        %v1875 = vsel %vm407, %v1872, 0.0
        %s1876 = scalar_lea.vmem [#allocation5], 1088
        %v1877 = vld [vmem:[%s1876] sm:$0xff]
        %v1878 = vld [vmem:[%s1876 + $0x8] sm:$0xff]
        %v1879 = vld [vmem:[%s1876 + $0x10] sm:$0xff]
        %v1880 = vld [vmem:[%s1876 + $0x18] sm:$0xff]
        %v1881 = vld [vmem:[%s1876 + $0x20] sm:$0xff]
        %v1882 = vld [vmem:[%s1876 + $0x28] sm:$0xff]
        %v1883 = vld [vmem:[%s1876 + $0x30] sm:$0xff]
        %v1884 = vld [vmem:[%s1876 + $0x38] sm:$0xff]
        %v1885 = vsel %vm247, %v1873, 0
        %v1888 = vsel %vm247, %v1875, 0
        %1890 = vmatprep.subr.mxu0 0.0
        %1891 = vmatpush1.msra.mxu0 0.0
        %1892 = vmatprep.subr.mxu0 0.0
        %1893 = vmatpush1.msra.mxu0 0.0
        %1894 = vmatprep.subr.mxu0 0.0
        %1895 = vmatpush1.msra.mxu0 0.0
        %1896 = vmatprep.subr.mxu0 0.0
        %1897 = vmatpush1.msra.mxu0 0.0
        %1898 = vmatprep.subr.mxu0 0.0
        %1899 = vmatpush1.msra.mxu0 0.0
        %1900 = vmatprep.subr.mxu0 0.0
        %1901 = vmatpush1.msra.mxu0 0.0
        %1902 = vmatprep.subr.mxu0 0.0
        %1903 = vmatpush1.msra.mxu0 0.0
        %1904 = vmatprep.subr.mxu0 0.0
        %1905 = vmatpush1.msra.mxu0 0.0
        %1906 = vmatprep.subr.mxu0 0.0
        %1907 = vmatpush1.msra.mxu0 %v1884
        %1908 = vmatprep.subr.mxu0 0.0
        %1909 = vmatpush1.msra.mxu0 %v1883
        %1910 = vmatprep.subr.mxu0 0.0
        %1911 = vmatpush1.msra.mxu0 %v1882
        %1912 = vmatprep.subr.mxu0 0.0
        %1913 = vmatpush1.msra.mxu0 %v1881
        %1914 = vmatprep.subr.mxu0 0.0
        %1915 = vmatpush1.msra.mxu0 %v1880
        %1916 = vmatprep.subr.mxu0 0.0
        %1917 = vmatpush1.msra.mxu0 %v1879
        %1918 = vmatprep.subr.mxu0 0.0
        %1919 = vmatpush1.msra.mxu0 %v1878
        %1920 = vmatprep.subr.mxu0 0.0
        %1921 = vmatpush1.msra.mxu0 %v1877
        %1922 = vmatprep.subr.mxu0 0.0
        %1923 = vmatpush2.msra.mxu0 0.0
        %1924 = vmatprep.subr.mxu0 0.0
        %1925 = vmatpush2.msra.mxu0 0.0
        %1926 = vmatprep.subr.mxu0 0.0
        %1927 = vmatpush2.msra.mxu0 0.0
        %1928 = vmatprep.subr.mxu0 0.0
        %1929 = vmatpush2.msra.mxu0 0.0
        %1930 = vmatprep.subr.mxu0 0.0
        %1931 = vmatpush2.msra.mxu0 0.0
        %1932 = vmatprep.subr.mxu0 0.0
        %1933 = vmatpush2.msra.mxu0 0.0
        %1934 = vmatprep.subr.mxu0 0.0
        %1935 = vmatpush2.msra.mxu0 0.0
        %1936 = vmatprep.subr.mxu0 0.0
        %1937 = vmatpush2.msra.mxu0 0.0
        %1938 = vmatprep.subr.mxu0 0.0
        %1939 = vmatpush2.msra.mxu0 0.0
        %1940 = vmatprep.subr.mxu0 0.0
        %1941 = vmatpush2.msra.mxu0 0.0
        %1942 = vmatprep.subr.mxu0 0.0
        %1943 = vmatpush2.msra.mxu0 0.0
        %1944 = vmatprep.subr.mxu0 0.0
        %1945 = vmatpush2.msra.mxu0 0.0
        %1946 = vmatprep.subr.mxu0 0.0
        %1947 = vmatpush2.msra.mxu0 0.0
        %1948 = vmatprep.subr.mxu0 0.0
        %1949 = vmatpush2.msra.mxu0 0.0
        %1950 = vmatprep.subr.mxu0 0.0
        %1951 = vmatpush2.msra.mxu0 0.0
        %1952 = vmatprep.subr.mxu0 0.0
        %1953 = vmatpush2.msra.mxu0 0.0
        %1954 = vmatprep.mubr.f32.mxu0 0.0
        %1955 = vmatmul.mubr.f32.gmra.mxu0 %v1885
        %v1956 = vpop.f32.mrf.mxu0
        %v1957 = vadd.f32 0.0, %v1956
        %v1958 = vpop.f32.mrf.mxu0
        %1959 = vmatprep.mubr.f32.mxu0 0.0
        %1960 = vmatmul.mubr.f32.gmra.mxu0 %v1888
        %v1961 = vpop.f32.mrf.mxu0
        %v1962 = vadd.f32 0.0, %v1961
        %v1963 = vpop.f32.mrf.mxu0
        %1964 = vdwg.mxu0
        %v1965 = vadd.f32 %v1863, %v1957
        %v1966 = vadd.f32 %v1868, %v1962
        %s1967 = scalar_lea.vmem [#allocation7], 5
        %v1968 = vld [vmem:[%s1967] sm:$0x1]
        %v1970 = vlaneseq
        %v1971 = vshrl.u32 %v1970, 7
        %v1972 = vsub.s32 0, %v1971
        %v1973 = vrot.slane %v1968, %v1972
        %v1975 = vadd.f32 %v1965, %v1973
        %v1976 = vadd.f32 %v1966, %v1973
        %v1977 = vadd.f32 %v1975, %v1391
        %v1978 = vadd.f32 %v1976, %v1392
        %1979 = vst.msk [vmem:[%s217] sm:$0xff] %vm247, %v1977
        %1980 = vst.msk [vmem:[%s217 + $0x8] sm:$0xff] %vm247, %v1978
        %s1981 = sand.u32 %s97, 1
        %s1982 = scalar_lea.sflag [#allocation4], %s1981
        %s1983 = sand.u32 %s97, 1
        %s1984 = smul.addr %s1983, 16
        %s1985 = scalar_lea.vmem [#allocation8], %s1984
        // Predicated region
        $region45: #{tpu_custom_call.1} parent=31 // pred_check
          %p1986 = pneg %p107
        $region46: #{tpu_custom_call.1} parent=31 // pred_check_branch
          %1988 = sbr.rel (%p1986) target = $region48
        $region47: #{tpu_custom_call.1} parent=31 // pred_region
          %s1990 = ssub.s32 256, 256
          %1991 = vsyncadd %s1982, %s1990
          %s1992 = smul.addr %s21, 2
          %s1993 = smul.addr %s1992, 128
          %s1994 = scalar_lea.hbm %s3, %s1993
          %s1995 = sshll.u32 %s1985, 4
          %s1996 = int_to_ptr.vmem [resolvable:$true] %s1995
          %2001 = dma.vmem_to_hbm [thread:$0]  %s1996, 256, %s1994, %s1982, 128, 128, 8
        $region48: #{tpu_custom_call.1} parent=31 // pred_fallthru
          _
      $region32: #{tpu_custom_call.1} parent=5 // pred_fallthru
        _
      %p2002 = scmp.le.s32.totalorder 2, %s16
      // Predicated region
      $region49: #{tpu_custom_call.1} parent=5 // pred_check
        %p2003 = pneg %p2002
      $region50: #{tpu_custom_call.1} parent=5 // pred_check_branch
        %2005 = sbr.rel (%p2003) target = $region52
      $region51: #{tpu_custom_call.1} parent=5 // pred_region
        %s2006 = ssub.s32 %s16, 2
        // Predicated region
        $region53: #{tpu_custom_call.1} parent=51 // pred_check
          %p2007 = pneg %p113
        $region54: #{tpu_custom_call.1} parent=51 // pred_check_branch
          %2009 = sbr.rel (%p2007) target = $region56
        $region55: #{tpu_custom_call.1} parent=51 // pred_region
          %s2010 = sand.u32 %s98, 1
          %s2011 = scalar_lea.sflag [#allocation4], %s2010
          %s2012 = sand.u32 %s98, 1
          %s2013 = smul.addr %s2012, 16
          %s2014 = scalar_lea.vmem [#allocation8], %s2013
          %2015 = dma.done %s2011, 256
        $region56: #{tpu_custom_call.1} parent=51 // pred_fallthru
          _
      $region52: #{tpu_custom_call.1} parent=5 // pred_fallthru
        _
    $region6: #{tpu_custom_call.1} parent=1 // loop_footer
      %s20 = sadd.s32 1, %s16
    $region7: #{tpu_custom_call.1} parent=1 // loop_footer_branch
      %15 = sbr.rel target = $region3
    $region8: #{tpu_custom_call.1} parent=1 // loop_exit
      _
    %2016 = vsyncpa [#allocation3], 1
    %s2017 = scalar_lea.sflag [#allocation3], 1
    %2018 = vsyncpa %s2017, 1
    %2019 = vsyncpa [#allocation6], 1
    %2020 = vsyncpa [#allocation4], 1
    %s2021 = scalar_lea.sflag [#allocation4], 1
    %2022 = vsyncpa %s2021, 1

</llo_original>
